<compile_context>
chip_gen: v7x
topology: tpu7x:2x2x1
jax: 0.10.0
libtpu: 0.0.40
codegen_flags: <defaults>
</compile_context>

<pallas_src>
import math

import jax
import jax.numpy as jnp
from jax.experimental import pallas as pl
from jax.experimental.pallas import tpu as pltpu

# -------------------- model config (small, lane/sublane friendly) --------------------
D_MODEL = 128
D_K = 32
D_V = 32
H = 4
D_FF = 256
EPS = 1e-5  # torch.nn.LayerNorm default

assert H * D_K == D_MODEL and H * D_V == D_MODEL and D_FF == 2 * D_MODEL

# Row layout of the packed (13, 128) parameter slab.
_P_BQ, _P_BK, _P_BV = 0, 1, 2
_P_BO = 3
_P_G_MHA, _P_B_MHA = 4, 5
_P_G_ENC, _P_B_ENC = 6, 7
_P_B2 = 8
_P_G_FF, _P_B_FF = 9, 10
_P_B1_LO, _P_B1_HI = 11, 12
_P_ROWS = 13


def _layernorm(x, gamma, beta):
    mu = jnp.mean(x, axis=-1, keepdims=True)
    var = jnp.mean((x - mu) ** 2, axis=-1, keepdims=True)
    return (x - mu) * jax.lax.rsqrt(var + EPS) * gamma + beta


# -------------------- shared kernel tail: attention core + W_o + LNs + FFN --------------------
def _attention_ffn_tail(x, Q, K, V, wo, w1, w2, P, att_sc, o_ref):
    """x, Q, K, V: (M, 128) f32 (scale already folded into Q). wo/w1/w2: bf16 weights."""
    BT, S, D = o_ref.shape
    bf16 = jnp.bfloat16
    f32 = jnp.float32

    # Attention core per (batch element, head).  Head outputs are lane-concatenated and
    # written into the VMEM scratch so live ranges stay bounded across the batch loop.
    for b in range(BT):                      # static unroll; BT kept small by the wrapper
        r0 = b * S
        heads = []
        for h in range(H):
            c = h * D_K
            qh = Q[r0:r0 + S, c:c + D_K].astype(bf16)
            kh = K[r0:r0 + S, c:c + D_K].astype(bf16)
            vh = V[r0:r0 + S, h * D_V:(h + 1) * D_V].astype(bf16)
            s = jax.lax.dot_general(qh, kh, (((1,), (1,)), ((), ())),
                                    preferred_element_type=f32)      # (S, S)
            p = jnp.exp(s - jnp.max(s, axis=-1, keepdims=True))
            inv = pl.reciprocal(jnp.sum(p, axis=-1, keepdims=True), approx=True)
            # normalize AFTER the PV matmul: (S, D_V) multiply instead of (S, S)
            heads.append(jnp.dot(p.astype(bf16), vh, preferred_element_type=f32) * inv)
        att_sc[r0:r0 + S, :] = jnp.concatenate(heads, axis=-1).astype(bf16)

    # Single output projection over the whole block: K=128 contraction.
    att = jnp.dot(att_sc[...], wo, preferred_element_type=f32) + P[_P_BO:_P_BO + 1, :]
    mha = _layernorm(x + att, P[_P_G_MHA:_P_G_MHA + 1, :], P[_P_B_MHA:_P_B_MHA + 1, :])
    y = _layernorm(x + mha, P[_P_G_ENC:_P_G_ENC + 1, :], P[_P_B_ENC:_P_B_ENC + 1, :])

    # Position-wise feed-forward on the whole flattened block.
    b1 = jnp.concatenate([P[_P_B1_LO:_P_B1_LO + 1, :], P[_P_B1_HI:_P_B1_HI + 1, :]], axis=-1)
    h1 = jnp.maximum(jnp.dot(y.astype(bf16), w1, preferred_element_type=f32) + b1, 0.0)
    ff = jnp.dot(h1.astype(bf16), w2, preferred_element_type=f32) + P[_P_B2:_P_B2 + 1, :]
    out = _layernorm(y + ff, P[_P_G_FF:_P_G_FF + 1, :], P[_P_B_FF:_P_B_FF + 1, :])

    o_ref[...] = out.reshape(BT, S, D)


# -------------------- kernels --------------------
def _self_attn_kernel(x_ref, wqkv_ref, wo_ref, w1_ref, w2_ref, p_ref, o_ref, att_sc):
    """Self-attention path: q is k is v -> one input stream, one fused QKV matmul."""
    BT, S, D = x_ref.shape
    bf16 = jnp.bfloat16
    f32 = jnp.float32
    x = x_ref[...].reshape(BT * S, D)
    P = p_ref[...]
    b_qkv = jnp.concatenate([P[_P_BQ:_P_BQ + 1, :], P[_P_BK:_P_BK + 1, :],
                             P[_P_BV:_P_BV + 1, :]], axis=-1)            # (1, 3*D)
    qkv = jnp.dot(x.astype(bf16), wqkv_ref[...], preferred_element_type=f32) + b_qkv
    Q = qkv[:, 0:D_MODEL]
    K = qkv[:, D_MODEL:2 * D_MODEL]
    V = qkv[:, 2 * D_MODEL:3 * D_MODEL]
    _attention_ffn_tail(x, Q, K, V, wo_ref[...], w1_ref[...], w2_ref[...], P, att_sc, o_ref)


def _cross_attn_kernel(q_ref, k_ref, v_ref, wqkv_ref, wo_ref, w1_ref, w2_ref, p_ref,
                       o_ref, att_sc):
    """General path: distinct q/k/v streams (weights still shared/resident)."""
    BT, S, D = q_ref.shape
    M = BT * S
    bf16 = jnp.bfloat16
    f32 = jnp.float32
    x = q_ref[...].reshape(M, D)
    W = wqkv_ref[...]
    P = p_ref[...]
    Q = jnp.dot(x.astype(bf16), W[:, 0:D_MODEL],
                preferred_element_type=f32) + P[_P_BQ:_P_BQ + 1, :]
    K = jnp.dot(k_ref[...].reshape(M, D).astype(bf16), W[:, D_MODEL:2 * D_MODEL],
                preferred_element_type=f32) + P[_P_BK:_P_BK + 1, :]
    V = jnp.dot(v_ref[...].reshape(M, D).astype(bf16), W[:, 2 * D_MODEL:3 * D_MODEL],
                preferred_element_type=f32) + P[_P_BV:_P_BV + 1, :]
    _attention_ffn_tail(x, Q, K, V, wo_ref[...], w1_ref[...], w2_ref[...], P, att_sc, o_ref)


# -------------------- wrapper --------------------
def _choose_bt(B, S, max_rows=1024, max_bt=8):
    # Largest divisor of B with bt*S <= max_rows rows per block (big blocks amortize the
    # ~0.35us/step pipeline overhead; one TC on v5e/v6e so extra steps are pure overhead).
    # max_bt bounds the static per-batch attention unroll.
    best = 1
    for bt in range(1, min(B, max_bt) + 1):
        if B % bt == 0 and bt * S <= max_rows:
            best = bt
    return best


def _pack_params(params):
    m, f = params["mha"], params["pwff"]
    scale = jnp.float32(1.0 / math.sqrt(D_K))   # fold attention scale into Q projection
    wqkv = jnp.concatenate([m["wq"] * scale, m["wk"], m["wv"]], axis=1).astype(jnp.bfloat16)
    P = jnp.concatenate([
        m["bq"] * scale, m["bk"], m["bv"], m["bo"],
        m["ln_g"], m["ln_b"],
        params["lnorm_g"], params["lnorm_b"],
        f["b2"], f["ln_g"], f["ln_b"],
        f["b1"][:, :D_MODEL], f["b1"][:, D_MODEL:],
    ], axis=0).astype(jnp.float32)                                       # (13, 128)
    return (wqkv, m["wo"].astype(jnp.bfloat16), f["w1"].astype(jnp.bfloat16),
            f["w2"].astype(jnp.bfloat16), P)


def encoder_layer(q, k, v, params, bt=None):
    B, S, D = q.shape
    assert D == D_MODEL
    assert S % 8 == 0, "S must be a multiple of 8 so in-kernel reshapes are layout no-ops"
    if bt is None:
        bt = _choose_bt(B, S)

    wqkv, wo, w1, w2, P = _pack_params(params)
    weights = [wqkv, wo, w1, w2, P]

    act_spec = pl.BlockSpec((bt, S, D_MODEL), lambda i: (i, 0, 0))

    def full_spec(x):
        nd = x.ndim
        return pl.BlockSpec(x.shape, lambda i, nd=nd: (0,) * nd)   # resident across steps

    self_attention = (k is q) and (v is q)
    if self_attention:
        kernel = _self_attn_kernel
        inputs = [q] + weights
        in_specs = [act_spec] + [full_spec(w) for w in weights]
    else:
        kernel = _cross_attn_kernel
        inputs = [q, k, v] + weights
        in_specs = [act_spec] * 3 + [full_spec(w) for w in weights]

    # TODO(synk): on v7x a grid length that is a multiple of 2 would feed both TCs; for the
    #             shipped tiny shapes a single big block is the better trade.
    return pl.pallas_call(
        kernel,
        out_shape=jax.ShapeDtypeStruct((B, S, D_MODEL), jnp.float32),
        grid=(B // bt,),
        in_specs=in_specs,
        out_specs=act_spec,
        scratch_shapes=[pltpu.VMEM((bt * S, H * D_V), jnp.bfloat16)],   # head-concat buffer
        compiler_params=pltpu.CompilerParams(dimension_semantics=("parallel",)),
    )(*inputs)


# -------------------- deterministic parameter init --------------------
def init_params(key):
    ks = jax.random.split(key, 12)
    s = 0.02

    def w(kk, shape):
        return (s * jax.random.normal(kk, shape)).astype(jnp.float32)

    mha = dict(
        wq=w(ks[0], (D_MODEL, H * D_K)), bq=w(ks[1], (1, H * D_K)),
        wk=w(ks[2], (D_MODEL, H * D_K)), bk=w(ks[3], (1, H * D_K)),
        wv=w(ks[4], (D_MODEL, H * D_V)), bv=w(ks[5], (1, H * D_V)),
        wo=w(ks[6], (H * D_V, D_MODEL)), bo=w(ks[7], (1, D_MODEL)),
        ln_g=jnp.ones((1, D_MODEL), jnp.float32), ln_b=jnp.zeros((1, D_MODEL), jnp.float32),
    )
    pwff = dict(
        w1=w(ks[8], (D_MODEL, D_FF)), b1=w(ks[9], (1, D_FF)),
        w2=w(ks[10], (D_FF, D_MODEL)), b2=w(ks[11], (1, D_MODEL)),
        ln_g=jnp.ones((1, D_MODEL), jnp.float32), ln_b=jnp.zeros((1, D_MODEL), jnp.float32),
    )
    return dict(mha=mha, pwff=pwff,
                lnorm_g=jnp.ones((1, D_MODEL), jnp.float32),
                lnorm_b=jnp.zeros((1, D_MODEL), jnp.float32))


# -------------------- pure-JAX f32 reference (forward semantics of the PyTorch module) ----------
def ref_encoder_layer(q, k, v, p):
    m = p["mha"]
    Q = q @ m["wq"] + m["bq"]
    K = k @ m["wk"] + m["bk"]
    V = v @ m["wv"] + m["bv"]
    B, S, _ = q.shape
    Qh = Q.reshape(B, S, H, D_K).transpose(0, 2, 1, 3)
    Kh = K.reshape(B, S, H, D_K).transpose(0, 2, 1, 3)
    Vh = V.reshape(B, S, H, D_V).transpose(0, 2, 1, 3)
    scores = jnp.einsum("bhqd,bhkd->bhqk", Qh, Kh) / math.sqrt(D_K)
    att = jax.nn.softmax(scores, axis=-1)
    out = jnp.einsum("bhqk,bhkd->bhqd", att, Vh).transpose(0, 2, 1, 3).reshape(B, S, H * D_V)
    out = out @ m["wo"] + m["bo"]
    mha_out = _layernorm(q + out, m["ln_g"], m["ln_b"])
    x = _layernorm(q + mha_out, p["lnorm_g"], p["lnorm_b"])
    f = p["pwff"]
    h1 = jax.nn.relu(x @ f["w1"] + f["b1"])
    o = h1 @ f["w2"] + f["b2"]
    return _layernorm(x + o, f["ln_g"], f["ln_b"])


if __name__ == "__main__":
    key = jax.random.PRNGKey(0)
    kq, kk, kv, kp = jax.random.split(key, 4)
    B, S = 2, 16
    x = jax.random.normal(kq, (B, S, D_MODEL), jnp.float32)
    k = jax.random.normal(kk, (B, S, D_MODEL), jnp.float32)
    v = jax.random.normal(kv, (B, S, D_MODEL), jnp.float32)
    params = init_params(kp)

    # bf16 MXU operands (f32 accumulation) -> tolerance loosened from 1e-4 to 2e-2.
    TOL = 2e-2

    # Self-attention path (q is k is v): fused QKV matmul, single input stream.
    out_sa = jax.block_until_ready(encoder_layer(x, x, x, params))
    ref_sa = ref_encoder_layer(x, x, x, params)
    assert out_sa.shape == (B, S, D_MODEL)
    assert jnp.allclose(out_sa, ref_sa, atol=TOL, rtol=TOL), \
        float(jnp.max(jnp.abs(out_sa - ref_sa)))

    # General cross-attention path (distinct q/k/v).
    out_ca = jax.block_until_ready(encoder_layer(x, k, v, params))
    ref_ca = ref_encoder_layer(x, k, v, params)
    assert jnp.allclose(out_ca, ref_ca, atol=TOL, rtol=TOL), \
        float(jnp.max(jnp.abs(out_ca - ref_ca)))

    print("KERNEL_OK")
</pallas_src>

<mosaic_0001>
module attributes {stable_mosaic.version = 11 : i64} {
  func.func @_self_attn_kernel(%arg0: i32, %arg1: memref<2x16x128xf32, #tpu.memory_space<vmem>>, %arg2: memref<128x384xbf16, #tpu.memory_space<vmem>>, %arg3: memref<128x128xbf16, #tpu.memory_space<vmem>>, %arg4: memref<128x256xbf16, #tpu.memory_space<vmem>>, %arg5: memref<256x128xbf16, #tpu.memory_space<vmem>>, %arg6: memref<13x128xf32, #tpu.memory_space<vmem>>, %arg7: memref<2x16x128xf32, #tpu.memory_space<vmem>>, %arg8: memref<32x128xbf16, #tpu.memory_space<vmem>>) attributes {dimension_semantics = [#tpu.dimension_semantics<parallel>], iteration_bounds = array<i64: 1>, scalar_prefetch = 0 : i64, scratch_operands = 1 : i64, tpu.core_type = #tpu.core_type<tc>, window_params = [{transform_indices = @transform_0, window_bounds = array<i64: 2, 16, 128>}, {pipeline_mode = #tpu.pipeline_mode<synchronous>, transform_indices = @transform_1, window_bounds = array<i64: 128, 384>}, {pipeline_mode = #tpu.pipeline_mode<synchronous>, transform_indices = @transform_2, window_bounds = array<i64: 128, 128>}, {pipeline_mode = #tpu.pipeline_mode<synchronous>, transform_indices = @transform_3, window_bounds = array<i64: 128, 256>}, {pipeline_mode = #tpu.pipeline_mode<synchronous>, transform_indices = @transform_4, window_bounds = array<i64: 256, 128>}, {pipeline_mode = #tpu.pipeline_mode<synchronous>, transform_indices = @transform_5, window_bounds = array<i64: 13, 128>}, {transform_indices = @transform_6, window_bounds = array<i64: 2, 16, 128>}]} {
    %c0 = arith.constant 0 : index
    %c0_0 = arith.constant 0 : index
    %c0_1 = arith.constant 0 : index
    %0 = vector.load %arg1[%c0, %c0_0, %c0_1] : memref<2x16x128xf32, #tpu.memory_space<vmem>>, vector<2x16x128xf32>
    %1 = vector.shape_cast %0 : vector<2x16x128xf32> to vector<32x128xf32>
    %c0_2 = arith.constant 0 : index
    %c0_3 = arith.constant 0 : index
    %2 = vector.load %arg6[%c0_2, %c0_3] : memref<13x128xf32, #tpu.memory_space<vmem>>, vector<13x128xf32>
    %3 = vector.extract_strided_slice %2 {offsets = [0, 0], sizes = [1, 128], strides = [1, 1]} : vector<13x128xf32> to vector<1x128xf32>
    %4 = vector.extract_strided_slice %2 {offsets = [1, 0], sizes = [1, 128], strides = [1, 1]} : vector<13x128xf32> to vector<1x128xf32>
    %5 = vector.extract_strided_slice %2 {offsets = [2, 0], sizes = [1, 128], strides = [1, 1]} : vector<13x128xf32> to vector<1x128xf32>
    %6 = tpu.concatenate %3, %4, %5 in 1 : vector<1x128xf32>, vector<1x128xf32>, vector<1x128xf32> -> vector<1x384xf32>
    %7 = arith.truncf %1 : vector<32x128xf32> to vector<32x128xbf16>
    %c0_4 = arith.constant 0 : index
    %c0_5 = arith.constant 0 : index
    %8 = vector.load %arg2[%c0_4, %c0_5] : memref<128x384xbf16, #tpu.memory_space<vmem>>, vector<128x384xbf16>
    %cst = arith.constant dense<0.000000e+00> : vector<32x384xf32>
    %9 = tpu.matmul %7, %8, %cst {dimension_numbers = #tpu.dot_dimension_numbers<[1], [0], [0], [1], [0, 0, 1, 1], [], []>} : vector<32x128xbf16>, vector<128x384xbf16>, vector<32x384xf32> -> vector<32x384xf32>
    %10 = vector.broadcast %6 : vector<1x384xf32> to vector<32x384xf32>
    %11 = arith.addf %9, %10 : vector<32x384xf32>
    %12 = vector.extract_strided_slice %11 {offsets = [0, 0], sizes = [32, 128], strides = [1, 1]} : vector<32x384xf32> to vector<32x128xf32>
    %13 = vector.extract_strided_slice %11 {offsets = [0, 128], sizes = [32, 128], strides = [1, 1]} : vector<32x384xf32> to vector<32x128xf32>
    %14 = vector.extract_strided_slice %11 {offsets = [0, 256], sizes = [32, 128], strides = [1, 1]} : vector<32x384xf32> to vector<32x128xf32>
    %c0_6 = arith.constant 0 : index
    %c0_7 = arith.constant 0 : index
    %15 = vector.load %arg3[%c0_6, %c0_7] : memref<128x128xbf16, #tpu.memory_space<vmem>>, vector<128x128xbf16>
    %c0_8 = arith.constant 0 : index
    %c0_9 = arith.constant 0 : index
    %16 = vector.load %arg4[%c0_8, %c0_9] : memref<128x256xbf16, #tpu.memory_space<vmem>>, vector<128x256xbf16>
    %c0_10 = arith.constant 0 : index
    %c0_11 = arith.constant 0 : index
    %17 = vector.load %arg5[%c0_10, %c0_11] : memref<256x128xbf16, #tpu.memory_space<vmem>>, vector<256x128xbf16>
    %18 = vector.extract_strided_slice %12 {offsets = [0, 0], sizes = [16, 32], strides = [1, 1]} : vector<32x128xf32> to vector<16x32xf32>
    %19 = arith.truncf %18 : vector<16x32xf32> to vector<16x32xbf16>
    %20 = vector.extract_strided_slice %13 {offsets = [0, 0], sizes = [16, 32], strides = [1, 1]} : vector<32x128xf32> to vector<16x32xf32>
    %21 = arith.truncf %20 : vector<16x32xf32> to vector<16x32xbf16>
    %22 = vector.extract_strided_slice %14 {offsets = [0, 0], sizes = [16, 32], strides = [1, 1]} : vector<32x128xf32> to vector<16x32xf32>
    %23 = arith.truncf %22 : vector<16x32xf32> to vector<16x32xbf16>
    %cst_12 = arith.constant dense<0.000000e+00> : vector<16x16xf32>
    %24 = tpu.matmul %19, %21, %cst_12 {dimension_numbers = #tpu.dot_dimension_numbers<[1], [1], [0], [0], [0, 0, 1, 0], [], []>} : vector<16x32xbf16>, vector<16x32xbf16>, vector<16x16xf32> -> vector<16x16xf32>
    %cst_13 = arith.constant dense<0xFF800000> : vector<16xf32>
    %25 = vector.multi_reduction <maximumf>, %24, %cst_13 [1] : vector<16x16xf32> to vector<16xf32>
    %26 = vector.shape_cast %25 : vector<16xf32> to vector<16x1xf32>
    %27 = vector.broadcast %26 : vector<16x1xf32> to vector<16x16xf32>
    %28 = arith.subf %24, %27 : vector<16x16xf32>
    %29 = math.exp %28 : vector<16x16xf32>
    %cst_14 = arith.constant dense<0.000000e+00> : vector<16xf32>
    %30 = vector.multi_reduction <add>, %29, %cst_14 [1] : vector<16x16xf32> to vector<16xf32>
    %31 = vector.shape_cast %30 : vector<16xf32> to vector<16x1xf32>
    %32 = tpu.reciprocal %31 {approx = true} : vector<16x1xf32> -> vector<16x1xf32>
    %33 = arith.truncf %29 : vector<16x16xf32> to vector<16x16xbf16>
    %cst_15 = arith.constant dense<0.000000e+00> : vector<16x32xf32>
    %34 = tpu.matmul %33, %23, %cst_15 {dimension_numbers = #tpu.dot_dimension_numbers<[1], [0], [0], [1], [0, 0, 1, 1], [], []>} : vector<16x16xbf16>, vector<16x32xbf16>, vector<16x32xf32> -> vector<16x32xf32>
    %35 = vector.broadcast %32 : vector<16x1xf32> to vector<16x32xf32>
    %36 = arith.mulf %34, %35 : vector<16x32xf32>
    %37 = vector.extract_strided_slice %12 {offsets = [0, 32], sizes = [16, 32], strides = [1, 1]} : vector<32x128xf32> to vector<16x32xf32>
    %38 = arith.truncf %37 : vector<16x32xf32> to vector<16x32xbf16>
    %39 = vector.extract_strided_slice %13 {offsets = [0, 32], sizes = [16, 32], strides = [1, 1]} : vector<32x128xf32> to vector<16x32xf32>
    %40 = arith.truncf %39 : vector<16x32xf32> to vector<16x32xbf16>
    %41 = vector.extract_strided_slice %14 {offsets = [0, 32], sizes = [16, 32], strides = [1, 1]} : vector<32x128xf32> to vector<16x32xf32>
    %42 = arith.truncf %41 : vector<16x32xf32> to vector<16x32xbf16>
    %cst_16 = arith.constant dense<0.000000e+00> : vector<16x16xf32>
    %43 = tpu.matmul %38, %40, %cst_16 {dimension_numbers = #tpu.dot_dimension_numbers<[1], [1], [0], [0], [0, 0, 1, 0], [], []>} : vector<16x32xbf16>, vector<16x32xbf16>, vector<16x16xf32> -> vector<16x16xf32>
    %cst_17 = arith.constant dense<0xFF800000> : vector<16xf32>
    %44 = vector.multi_reduction <maximumf>, %43, %cst_17 [1] : vector<16x16xf32> to vector<16xf32>
    %45 = vector.shape_cast %44 : vector<16xf32> to vector<16x1xf32>
    %46 = vector.broadcast %45 : vector<16x1xf32> to vector<16x16xf32>
    %47 = arith.subf %43, %46 : vector<16x16xf32>
    %48 = math.exp %47 : vector<16x16xf32>
    %cst_18 = arith.constant dense<0.000000e+00> : vector<16xf32>
    %49 = vector.multi_reduction <add>, %48, %cst_18 [1] : vector<16x16xf32> to vector<16xf32>
    %50 = vector.shape_cast %49 : vector<16xf32> to vector<16x1xf32>
    %51 = tpu.reciprocal %50 {approx = true} : vector<16x1xf32> -> vector<16x1xf32>
    %52 = arith.truncf %48 : vector<16x16xf32> to vector<16x16xbf16>
    %cst_19 = arith.constant dense<0.000000e+00> : vector<16x32xf32>
    %53 = tpu.matmul %52, %42, %cst_19 {dimension_numbers = #tpu.dot_dimension_numbers<[1], [0], [0], [1], [0, 0, 1, 1], [], []>} : vector<16x16xbf16>, vector<16x32xbf16>, vector<16x32xf32> -> vector<16x32xf32>
    %54 = vector.broadcast %51 : vector<16x1xf32> to vector<16x32xf32>
    %55 = arith.mulf %53, %54 : vector<16x32xf32>
    %56 = vector.extract_strided_slice %12 {offsets = [0, 64], sizes = [16, 32], strides = [1, 1]} : vector<32x128xf32> to vector<16x32xf32>
    %57 = arith.truncf %56 : vector<16x32xf32> to vector<16x32xbf16>
    %58 = vector.extract_strided_slice %13 {offsets = [0, 64], sizes = [16, 32], strides = [1, 1]} : vector<32x128xf32> to vector<16x32xf32>
    %59 = arith.truncf %58 : vector<16x32xf32> to vector<16x32xbf16>
    %60 = vector.extract_strided_slice %14 {offsets = [0, 64], sizes = [16, 32], strides = [1, 1]} : vector<32x128xf32> to vector<16x32xf32>
    %61 = arith.truncf %60 : vector<16x32xf32> to vector<16x32xbf16>
    %cst_20 = arith.constant dense<0.000000e+00> : vector<16x16xf32>
    %62 = tpu.matmul %57, %59, %cst_20 {dimension_numbers = #tpu.dot_dimension_numbers<[1], [1], [0], [0], [0, 0, 1, 0], [], []>} : vector<16x32xbf16>, vector<16x32xbf16>, vector<16x16xf32> -> vector<16x16xf32>
    %cst_21 = arith.constant dense<0xFF800000> : vector<16xf32>
    %63 = vector.multi_reduction <maximumf>, %62, %cst_21 [1] : vector<16x16xf32> to vector<16xf32>
    %64 = vector.shape_cast %63 : vector<16xf32> to vector<16x1xf32>
    %65 = vector.broadcast %64 : vector<16x1xf32> to vector<16x16xf32>
    %66 = arith.subf %62, %65 : vector<16x16xf32>
    %67 = math.exp %66 : vector<16x16xf32>
    %cst_22 = arith.constant dense<0.000000e+00> : vector<16xf32>
    %68 = vector.multi_reduction <add>, %67, %cst_22 [1] : vector<16x16xf32> to vector<16xf32>
    %69 = vector.shape_cast %68 : vector<16xf32> to vector<16x1xf32>
    %70 = tpu.reciprocal %69 {approx = true} : vector<16x1xf32> -> vector<16x1xf32>
    %71 = arith.truncf %67 : vector<16x16xf32> to vector<16x16xbf16>
    %cst_23 = arith.constant dense<0.000000e+00> : vector<16x32xf32>
    %72 = tpu.matmul %71, %61, %cst_23 {dimension_numbers = #tpu.dot_dimension_numbers<[1], [0], [0], [1], [0, 0, 1, 1], [], []>} : vector<16x16xbf16>, vector<16x32xbf16>, vector<16x32xf32> -> vector<16x32xf32>
    %73 = vector.broadcast %70 : vector<16x1xf32> to vector<16x32xf32>
    %74 = arith.mulf %72, %73 : vector<16x32xf32>
    %75 = vector.extract_strided_slice %12 {offsets = [0, 96], sizes = [16, 32], strides = [1, 1]} : vector<32x128xf32> to vector<16x32xf32>
    %76 = arith.truncf %75 : vector<16x32xf32> to vector<16x32xbf16>
    %77 = vector.extract_strided_slice %13 {offsets = [0, 96], sizes = [16, 32], strides = [1, 1]} : vector<32x128xf32> to vector<16x32xf32>
    %78 = arith.truncf %77 : vector<16x32xf32> to vector<16x32xbf16>
    %79 = vector.extract_strided_slice %14 {offsets = [0, 96], sizes = [16, 32], strides = [1, 1]} : vector<32x128xf32> to vector<16x32xf32>
    %80 = arith.truncf %79 : vector<16x32xf32> to vector<16x32xbf16>
    %cst_24 = arith.constant dense<0.000000e+00> : vector<16x16xf32>
    %81 = tpu.matmul %76, %78, %cst_24 {dimension_numbers = #tpu.dot_dimension_numbers<[1], [1], [0], [0], [0, 0, 1, 0], [], []>} : vector<16x32xbf16>, vector<16x32xbf16>, vector<16x16xf32> -> vector<16x16xf32>
    %cst_25 = arith.constant dense<0xFF800000> : vector<16xf32>
    %82 = vector.multi_reduction <maximumf>, %81, %cst_25 [1] : vector<16x16xf32> to vector<16xf32>
    %83 = vector.shape_cast %82 : vector<16xf32> to vector<16x1xf32>
    %84 = vector.broadcast %83 : vector<16x1xf32> to vector<16x16xf32>
    %85 = arith.subf %81, %84 : vector<16x16xf32>
    %86 = math.exp %85 : vector<16x16xf32>
    %cst_26 = arith.constant dense<0.000000e+00> : vector<16xf32>
    %87 = vector.multi_reduction <add>, %86, %cst_26 [1] : vector<16x16xf32> to vector<16xf32>
    %88 = vector.shape_cast %87 : vector<16xf32> to vector<16x1xf32>
    %89 = tpu.reciprocal %88 {approx = true} : vector<16x1xf32> -> vector<16x1xf32>
    %90 = arith.truncf %86 : vector<16x16xf32> to vector<16x16xbf16>
    %cst_27 = arith.constant dense<0.000000e+00> : vector<16x32xf32>
    %91 = tpu.matmul %90, %80, %cst_27 {dimension_numbers = #tpu.dot_dimension_numbers<[1], [0], [0], [1], [0, 0, 1, 1], [], []>} : vector<16x16xbf16>, vector<16x32xbf16>, vector<16x32xf32> -> vector<16x32xf32>
    %92 = vector.broadcast %89 : vector<16x1xf32> to vector<16x32xf32>
    %93 = arith.mulf %91, %92 : vector<16x32xf32>
    %94 = tpu.concatenate %36, %55, %74, %93 in 1 : vector<16x32xf32>, vector<16x32xf32>, vector<16x32xf32>, vector<16x32xf32> -> vector<16x128xf32>
    %95 = arith.truncf %94 : vector<16x128xf32> to vector<16x128xbf16>
    %c0_28 = arith.constant 0 : index
    %c0_29 = arith.constant 0 : index
    %96 = vector.load %arg8[%c0_28, %c0_29] : memref<32x128xbf16, #tpu.memory_space<vmem>>, vector<16x128xbf16>
    tpu.vector_store %arg8[%c0_28, %c0_29], %95 {strides = array<i32>} : memref<32x128xbf16, #tpu.memory_space<vmem>>, vector<16x128xbf16>,
    %97 = vector.extract_strided_slice %12 {offsets = [16, 0], sizes = [16, 32], strides = [1, 1]} : vector<32x128xf32> to vector<16x32xf32>
    %98 = arith.truncf %97 : vector<16x32xf32> to vector<16x32xbf16>
    %99 = vector.extract_strided_slice %13 {offsets = [16, 0], sizes = [16, 32], strides = [1, 1]} : vector<32x128xf32> to vector<16x32xf32>
    %100 = arith.truncf %99 : vector<16x32xf32> to vector<16x32xbf16>
    %101 = vector.extract_strided_slice %14 {offsets = [16, 0], sizes = [16, 32], strides = [1, 1]} : vector<32x128xf32> to vector<16x32xf32>
    %102 = arith.truncf %101 : vector<16x32xf32> to vector<16x32xbf16>
    %cst_30 = arith.constant dense<0.000000e+00> : vector<16x16xf32>
    %103 = tpu.matmul %98, %100, %cst_30 {dimension_numbers = #tpu.dot_dimension_numbers<[1], [1], [0], [0], [0, 0, 1, 0], [], []>} : vector<16x32xbf16>, vector<16x32xbf16>, vector<16x16xf32> -> vector<16x16xf32>
    %cst_31 = arith.constant dense<0xFF800000> : vector<16xf32>
    %104 = vector.multi_reduction <maximumf>, %103, %cst_31 [1] : vector<16x16xf32> to vector<16xf32>
    %105 = vector.shape_cast %104 : vector<16xf32> to vector<16x1xf32>
    %106 = vector.broadcast %105 : vector<16x1xf32> to vector<16x16xf32>
    %107 = arith.subf %103, %106 : vector<16x16xf32>
    %108 = math.exp %107 : vector<16x16xf32>
    %cst_32 = arith.constant dense<0.000000e+00> : vector<16xf32>
    %109 = vector.multi_reduction <add>, %108, %cst_32 [1] : vector<16x16xf32> to vector<16xf32>
    %110 = vector.shape_cast %109 : vector<16xf32> to vector<16x1xf32>
    %111 = tpu.reciprocal %110 {approx = true} : vector<16x1xf32> -> vector<16x1xf32>
    %112 = arith.truncf %108 : vector<16x16xf32> to vector<16x16xbf16>
    %cst_33 = arith.constant dense<0.000000e+00> : vector<16x32xf32>
    %113 = tpu.matmul %112, %102, %cst_33 {dimension_numbers = #tpu.dot_dimension_numbers<[1], [0], [0], [1], [0, 0, 1, 1], [], []>} : vector<16x16xbf16>, vector<16x32xbf16>, vector<16x32xf32> -> vector<16x32xf32>
    %114 = vector.broadcast %111 : vector<16x1xf32> to vector<16x32xf32>
    %115 = arith.mulf %113, %114 : vector<16x32xf32>
    %116 = vector.extract_strided_slice %12 {offsets = [16, 32], sizes = [16, 32], strides = [1, 1]} : vector<32x128xf32> to vector<16x32xf32>
    %117 = arith.truncf %116 : vector<16x32xf32> to vector<16x32xbf16>
    %118 = vector.extract_strided_slice %13 {offsets = [16, 32], sizes = [16, 32], strides = [1, 1]} : vector<32x128xf32> to vector<16x32xf32>
    %119 = arith.truncf %118 : vector<16x32xf32> to vector<16x32xbf16>
    %120 = vector.extract_strided_slice %14 {offsets = [16, 32], sizes = [16, 32], strides = [1, 1]} : vector<32x128xf32> to vector<16x32xf32>
    %121 = arith.truncf %120 : vector<16x32xf32> to vector<16x32xbf16>
    %cst_34 = arith.constant dense<0.000000e+00> : vector<16x16xf32>
    %122 = tpu.matmul %117, %119, %cst_34 {dimension_numbers = #tpu.dot_dimension_numbers<[1], [1], [0], [0], [0, 0, 1, 0], [], []>} : vector<16x32xbf16>, vector<16x32xbf16>, vector<16x16xf32> -> vector<16x16xf32>
    %cst_35 = arith.constant dense<0xFF800000> : vector<16xf32>
    %123 = vector.multi_reduction <maximumf>, %122, %cst_35 [1] : vector<16x16xf32> to vector<16xf32>
    %124 = vector.shape_cast %123 : vector<16xf32> to vector<16x1xf32>
    %125 = vector.broadcast %124 : vector<16x1xf32> to vector<16x16xf32>
    %126 = arith.subf %122, %125 : vector<16x16xf32>
    %127 = math.exp %126 : vector<16x16xf32>
    %cst_36 = arith.constant dense<0.000000e+00> : vector<16xf32>
    %128 = vector.multi_reduction <add>, %127, %cst_36 [1] : vector<16x16xf32> to vector<16xf32>
    %129 = vector.shape_cast %128 : vector<16xf32> to vector<16x1xf32>
    %130 = tpu.reciprocal %129 {approx = true} : vector<16x1xf32> -> vector<16x1xf32>
    %131 = arith.truncf %127 : vector<16x16xf32> to vector<16x16xbf16>
    %cst_37 = arith.constant dense<0.000000e+00> : vector<16x32xf32>
    %132 = tpu.matmul %131, %121, %cst_37 {dimension_numbers = #tpu.dot_dimension_numbers<[1], [0], [0], [1], [0, 0, 1, 1], [], []>} : vector<16x16xbf16>, vector<16x32xbf16>, vector<16x32xf32> -> vector<16x32xf32>
    %133 = vector.broadcast %130 : vector<16x1xf32> to vector<16x32xf32>
    %134 = arith.mulf %132, %133 : vector<16x32xf32>
    %135 = vector.extract_strided_slice %12 {offsets = [16, 64], sizes = [16, 32], strides = [1, 1]} : vector<32x128xf32> to vector<16x32xf32>
    %136 = arith.truncf %135 : vector<16x32xf32> to vector<16x32xbf16>
    %137 = vector.extract_strided_slice %13 {offsets = [16, 64], sizes = [16, 32], strides = [1, 1]} : vector<32x128xf32> to vector<16x32xf32>
    %138 = arith.truncf %137 : vector<16x32xf32> to vector<16x32xbf16>
    %139 = vector.extract_strided_slice %14 {offsets = [16, 64], sizes = [16, 32], strides = [1, 1]} : vector<32x128xf32> to vector<16x32xf32>
    %140 = arith.truncf %139 : vector<16x32xf32> to vector<16x32xbf16>
    %cst_38 = arith.constant dense<0.000000e+00> : vector<16x16xf32>
    %141 = tpu.matmul %136, %138, %cst_38 {dimension_numbers = #tpu.dot_dimension_numbers<[1], [1], [0], [0], [0, 0, 1, 0], [], []>} : vector<16x32xbf16>, vector<16x32xbf16>, vector<16x16xf32> -> vector<16x16xf32>
    %cst_39 = arith.constant dense<0xFF800000> : vector<16xf32>
    %142 = vector.multi_reduction <maximumf>, %141, %cst_39 [1] : vector<16x16xf32> to vector<16xf32>
    %143 = vector.shape_cast %142 : vector<16xf32> to vector<16x1xf32>
    %144 = vector.broadcast %143 : vector<16x1xf32> to vector<16x16xf32>
    %145 = arith.subf %141, %144 : vector<16x16xf32>
    %146 = math.exp %145 : vector<16x16xf32>
    %cst_40 = arith.constant dense<0.000000e+00> : vector<16xf32>
    %147 = vector.multi_reduction <add>, %146, %cst_40 [1] : vector<16x16xf32> to vector<16xf32>
    %148 = vector.shape_cast %147 : vector<16xf32> to vector<16x1xf32>
    %149 = tpu.reciprocal %148 {approx = true} : vector<16x1xf32> -> vector<16x1xf32>
    %150 = arith.truncf %146 : vector<16x16xf32> to vector<16x16xbf16>
    %cst_41 = arith.constant dense<0.000000e+00> : vector<16x32xf32>
    %151 = tpu.matmul %150, %140, %cst_41 {dimension_numbers = #tpu.dot_dimension_numbers<[1], [0], [0], [1], [0, 0, 1, 1], [], []>} : vector<16x16xbf16>, vector<16x32xbf16>, vector<16x32xf32> -> vector<16x32xf32>
    %152 = vector.broadcast %149 : vector<16x1xf32> to vector<16x32xf32>
    %153 = arith.mulf %151, %152 : vector<16x32xf32>
    %154 = vector.extract_strided_slice %12 {offsets = [16, 96], sizes = [16, 32], strides = [1, 1]} : vector<32x128xf32> to vector<16x32xf32>
    %155 = arith.truncf %154 : vector<16x32xf32> to vector<16x32xbf16>
    %156 = vector.extract_strided_slice %13 {offsets = [16, 96], sizes = [16, 32], strides = [1, 1]} : vector<32x128xf32> to vector<16x32xf32>
    %157 = arith.truncf %156 : vector<16x32xf32> to vector<16x32xbf16>
    %158 = vector.extract_strided_slice %14 {offsets = [16, 96], sizes = [16, 32], strides = [1, 1]} : vector<32x128xf32> to vector<16x32xf32>
    %159 = arith.truncf %158 : vector<16x32xf32> to vector<16x32xbf16>
    %cst_42 = arith.constant dense<0.000000e+00> : vector<16x16xf32>
    %160 = tpu.matmul %155, %157, %cst_42 {dimension_numbers = #tpu.dot_dimension_numbers<[1], [1], [0], [0], [0, 0, 1, 0], [], []>} : vector<16x32xbf16>, vector<16x32xbf16>, vector<16x16xf32> -> vector<16x16xf32>
    %cst_43 = arith.constant dense<0xFF800000> : vector<16xf32>
    %161 = vector.multi_reduction <maximumf>, %160, %cst_43 [1] : vector<16x16xf32> to vector<16xf32>
    %162 = vector.shape_cast %161 : vector<16xf32> to vector<16x1xf32>
    %163 = vector.broadcast %162 : vector<16x1xf32> to vector<16x16xf32>
    %164 = arith.subf %160, %163 : vector<16x16xf32>
    %165 = math.exp %164 : vector<16x16xf32>
    %cst_44 = arith.constant dense<0.000000e+00> : vector<16xf32>
    %166 = vector.multi_reduction <add>, %165, %cst_44 [1] : vector<16x16xf32> to vector<16xf32>
    %167 = vector.shape_cast %166 : vector<16xf32> to vector<16x1xf32>
    %168 = tpu.reciprocal %167 {approx = true} : vector<16x1xf32> -> vector<16x1xf32>
    %169 = arith.truncf %165 : vector<16x16xf32> to vector<16x16xbf16>
    %cst_45 = arith.constant dense<0.000000e+00> : vector<16x32xf32>
    %170 = tpu.matmul %169, %159, %cst_45 {dimension_numbers = #tpu.dot_dimension_numbers<[1], [0], [0], [1], [0, 0, 1, 1], [], []>} : vector<16x16xbf16>, vector<16x32xbf16>, vector<16x32xf32> -> vector<16x32xf32>
    %171 = vector.broadcast %168 : vector<16x1xf32> to vector<16x32xf32>
    %172 = arith.mulf %170, %171 : vector<16x32xf32>
    %173 = tpu.concatenate %115, %134, %153, %172 in 1 : vector<16x32xf32>, vector<16x32xf32>, vector<16x32xf32>, vector<16x32xf32> -> vector<16x128xf32>
    %174 = arith.truncf %173 : vector<16x128xf32> to vector<16x128xbf16>
    %c16 = arith.constant 16 : index
    %c0_46 = arith.constant 0 : index
    %175 = vector.load %arg8[%c16, %c0_46] : memref<32x128xbf16, #tpu.memory_space<vmem>>, vector<16x128xbf16>
    tpu.vector_store %arg8[%c16, %c0_46], %174 {strides = array<i32>} : memref<32x128xbf16, #tpu.memory_space<vmem>>, vector<16x128xbf16>,
    %c0_47 = arith.constant 0 : index
    %c0_48 = arith.constant 0 : index
    %176 = vector.load %arg8[%c0_47, %c0_48] : memref<32x128xbf16, #tpu.memory_space<vmem>>, vector<32x128xbf16>
    %cst_49 = arith.constant dense<0.000000e+00> : vector<32x128xf32>
    %177 = tpu.matmul %176, %15, %cst_49 {dimension_numbers = #tpu.dot_dimension_numbers<[1], [0], [0], [1], [0, 0, 1, 1], [], []>} : vector<32x128xbf16>, vector<128x128xbf16>, vector<32x128xf32> -> vector<32x128xf32>
    %178 = vector.extract_strided_slice %2 {offsets = [3, 0], sizes = [1, 128], strides = [1, 1]} : vector<13x128xf32> to vector<1x128xf32>
    %179 = vector.broadcast %178 : vector<1x128xf32> to vector<32x128xf32>
    %180 = arith.addf %177, %179 : vector<32x128xf32>
    %181 = arith.addf %1, %180 : vector<32x128xf32>
    %182 = vector.extract_strided_slice %2 {offsets = [4, 0], sizes = [1, 128], strides = [1, 1]} : vector<13x128xf32> to vector<1x128xf32>
    %183 = vector.extract_strided_slice %2 {offsets = [5, 0], sizes = [1, 128], strides = [1, 1]} : vector<13x128xf32> to vector<1x128xf32>
    %cst_50 = arith.constant dense<0.000000e+00> : vector<32xf32>
    %184 = vector.multi_reduction <add>, %181, %cst_50 [1] : vector<32x128xf32> to vector<32xf32>
    %185 = vector.shape_cast %184 : vector<32xf32> to vector<32x1xf32>
    %cst_51 = arith.constant 1.280000e+02 : f32
    %186 = vector.broadcast %cst_51 : f32 to vector<32x1xf32>
    %187 = arith.divf %185, %186 : vector<32x1xf32>
    %188 = vector.broadcast %187 : vector<32x1xf32> to vector<32x128xf32>
    %189 = arith.subf %181, %188 : vector<32x128xf32>
    %190 = arith.mulf %189, %189 : vector<32x128xf32>
    %cst_52 = arith.constant dense<0.000000e+00> : vector<32xf32>
    %191 = vector.multi_reduction <add>, %190, %cst_52 [1] : vector<32x128xf32> to vector<32xf32>
    %192 = vector.shape_cast %191 : vector<32xf32> to vector<32x1xf32>
    %cst_53 = arith.constant 1.280000e+02 : f32
    %193 = vector.broadcast %cst_53 : f32 to vector<32x1xf32>
    %194 = arith.divf %192, %193 : vector<32x1xf32>
    %195 = vector.broadcast %187 : vector<32x1xf32> to vector<32x128xf32>
    %196 = arith.subf %181, %195 : vector<32x128xf32>
    %cst_54 = arith.constant 9.99999974E-6 : f32
    %197 = vector.broadcast %cst_54 : f32 to vector<32x1xf32>
    %198 = arith.addf %194, %197 : vector<32x1xf32>
    %199 = math.rsqrt %198 : vector<32x1xf32>
    %200 = vector.broadcast %199 : vector<32x1xf32> to vector<32x128xf32>
    %201 = arith.mulf %196, %200 : vector<32x128xf32>
    %202 = vector.broadcast %182 : vector<1x128xf32> to vector<32x128xf32>
    %203 = arith.mulf %201, %202 : vector<32x128xf32>
    %204 = vector.broadcast %183 : vector<1x128xf32> to vector<32x128xf32>
    %205 = arith.addf %203, %204 : vector<32x128xf32>
    %206 = arith.addf %1, %205 : vector<32x128xf32>
    %207 = vector.extract_strided_slice %2 {offsets = [6, 0], sizes = [1, 128], strides = [1, 1]} : vector<13x128xf32> to vector<1x128xf32>
    %208 = vector.extract_strided_slice %2 {offsets = [7, 0], sizes = [1, 128], strides = [1, 1]} : vector<13x128xf32> to vector<1x128xf32>
    %cst_55 = arith.constant dense<0.000000e+00> : vector<32xf32>
    %209 = vector.multi_reduction <add>, %206, %cst_55 [1] : vector<32x128xf32> to vector<32xf32>
    %210 = vector.shape_cast %209 : vector<32xf32> to vector<32x1xf32>
    %cst_56 = arith.constant 1.280000e+02 : f32
    %211 = vector.broadcast %cst_56 : f32 to vector<32x1xf32>
    %212 = arith.divf %210, %211 : vector<32x1xf32>
    %213 = vector.broadcast %212 : vector<32x1xf32> to vector<32x128xf32>
    %214 = arith.subf %206, %213 : vector<32x128xf32>
    %215 = arith.mulf %214, %214 : vector<32x128xf32>
    %cst_57 = arith.constant dense<0.000000e+00> : vector<32xf32>
    %216 = vector.multi_reduction <add>, %215, %cst_57 [1] : vector<32x128xf32> to vector<32xf32>
    %217 = vector.shape_cast %216 : vector<32xf32> to vector<32x1xf32>
    %cst_58 = arith.constant 1.280000e+02 : f32
    %218 = vector.broadcast %cst_58 : f32 to vector<32x1xf32>
    %219 = arith.divf %217, %218 : vector<32x1xf32>
    %220 = vector.broadcast %212 : vector<32x1xf32> to vector<32x128xf32>
    %221 = arith.subf %206, %220 : vector<32x128xf32>
    %cst_59 = arith.constant 9.99999974E-6 : f32
    %222 = vector.broadcast %cst_59 : f32 to vector<32x1xf32>
    %223 = arith.addf %219, %222 : vector<32x1xf32>
    %224 = math.rsqrt %223 : vector<32x1xf32>
    %225 = vector.broadcast %224 : vector<32x1xf32> to vector<32x128xf32>
    %226 = arith.mulf %221, %225 : vector<32x128xf32>
    %227 = vector.broadcast %207 : vector<1x128xf32> to vector<32x128xf32>
    %228 = arith.mulf %226, %227 : vector<32x128xf32>
    %229 = vector.broadcast %208 : vector<1x128xf32> to vector<32x128xf32>
    %230 = arith.addf %228, %229 : vector<32x128xf32>
    %231 = vector.extract_strided_slice %2 {offsets = [11, 0], sizes = [1, 128], strides = [1, 1]} : vector<13x128xf32> to vector<1x128xf32>
    %232 = vector.extract_strided_slice %2 {offsets = [12, 0], sizes = [1, 128], strides = [1, 1]} : vector<13x128xf32> to vector<1x128xf32>
    %233 = tpu.concatenate %231, %232 in 1 : vector<1x128xf32>, vector<1x128xf32> -> vector<1x256xf32>
    %234 = arith.truncf %230 : vector<32x128xf32> to vector<32x128xbf16>
    %cst_60 = arith.constant dense<0.000000e+00> : vector<32x256xf32>
    %235 = tpu.matmul %234, %16, %cst_60 {dimension_numbers = #tpu.dot_dimension_numbers<[1], [0], [0], [1], [0, 0, 1, 1], [], []>} : vector<32x128xbf16>, vector<128x256xbf16>, vector<32x256xf32> -> vector<32x256xf32>
    %236 = vector.broadcast %233 : vector<1x256xf32> to vector<32x256xf32>
    %237 = arith.addf %235, %236 : vector<32x256xf32>
    %cst_61 = arith.constant 0.000000e+00 : f32
    %238 = vector.broadcast %cst_61 : f32 to vector<32x256xf32>
    %239 = arith.maximumf %237, %238 : vector<32x256xf32>
    %240 = arith.truncf %239 : vector<32x256xf32> to vector<32x256xbf16>
    %cst_62 = arith.constant dense<0.000000e+00> : vector<32x128xf32>
    %241 = tpu.matmul %240, %17, %cst_62 {dimension_numbers = #tpu.dot_dimension_numbers<[1], [0], [0], [1], [0, 0, 1, 1], [], []>} : vector<32x256xbf16>, vector<256x128xbf16>, vector<32x128xf32> -> vector<32x128xf32>
    %242 = vector.extract_strided_slice %2 {offsets = [8, 0], sizes = [1, 128], strides = [1, 1]} : vector<13x128xf32> to vector<1x128xf32>
    %243 = vector.broadcast %242 : vector<1x128xf32> to vector<32x128xf32>
    %244 = arith.addf %241, %243 : vector<32x128xf32>
    %245 = arith.addf %230, %244 : vector<32x128xf32>
    %246 = vector.extract_strided_slice %2 {offsets = [9, 0], sizes = [1, 128], strides = [1, 1]} : vector<13x128xf32> to vector<1x128xf32>
    %247 = vector.extract_strided_slice %2 {offsets = [10, 0], sizes = [1, 128], strides = [1, 1]} : vector<13x128xf32> to vector<1x128xf32>
    %cst_63 = arith.constant dense<0.000000e+00> : vector<32xf32>
    %248 = vector.multi_reduction <add>, %245, %cst_63 [1] : vector<32x128xf32> to vector<32xf32>
    %249 = vector.shape_cast %248 : vector<32xf32> to vector<32x1xf32>
    %cst_64 = arith.constant 1.280000e+02 : f32
    %250 = vector.broadcast %cst_64 : f32 to vector<32x1xf32>
    %251 = arith.divf %249, %250 : vector<32x1xf32>
    %252 = vector.broadcast %251 : vector<32x1xf32> to vector<32x128xf32>
    %253 = arith.subf %245, %252 : vector<32x128xf32>
    %254 = arith.mulf %253, %253 : vector<32x128xf32>
    %cst_65 = arith.constant dense<0.000000e+00> : vector<32xf32>
    %255 = vector.multi_reduction <add>, %254, %cst_65 [1] : vector<32x128xf32> to vector<32xf32>
    %256 = vector.shape_cast %255 : vector<32xf32> to vector<32x1xf32>
    %cst_66 = arith.constant 1.280000e+02 : f32
    %257 = vector.broadcast %cst_66 : f32 to vector<32x1xf32>
    %258 = arith.divf %256, %257 : vector<32x1xf32>
    %259 = vector.broadcast %251 : vector<32x1xf32> to vector<32x128xf32>
    %260 = arith.subf %245, %259 : vector<32x128xf32>
    %cst_67 = arith.constant 9.99999974E-6 : f32
    %261 = vector.broadcast %cst_67 : f32 to vector<32x1xf32>
    %262 = arith.addf %258, %261 : vector<32x1xf32>
    %263 = math.rsqrt %262 : vector<32x1xf32>
    %264 = vector.broadcast %263 : vector<32x1xf32> to vector<32x128xf32>
    %265 = arith.mulf %260, %264 : vector<32x128xf32>
    %266 = vector.broadcast %246 : vector<1x128xf32> to vector<32x128xf32>
    %267 = arith.mulf %265, %266 : vector<32x128xf32>
    %268 = vector.broadcast %247 : vector<1x128xf32> to vector<32x128xf32>
    %269 = arith.addf %267, %268 : vector<32x128xf32>
    %270 = vector.shape_cast %269 : vector<32x128xf32> to vector<2x16x128xf32>
    %c0_68 = arith.constant 0 : index
    %c0_69 = arith.constant 0 : index
    %c0_70 = arith.constant 0 : index
    %271 = vector.load %arg7[%c0_68, %c0_69, %c0_70] : memref<2x16x128xf32, #tpu.memory_space<vmem>>, vector<2x16x128xf32>
    tpu.vector_store %arg7[%c0_68, %c0_69, %c0_70], %270 {strides = array<i32>} : memref<2x16x128xf32, #tpu.memory_space<vmem>>, vector<2x16x128xf32>,
    return
  }
  func.func @transform_0(%arg0: i32) -> (i32, i32, i32) {
    %c0_i32 = arith.constant 0 : i32
    %c0_i32_0 = arith.constant 0 : i32
    %c0_i32_1 = arith.constant 0 : i32
    return %arg0, %c0_i32, %c0_i32_0 : i32, i32, i32
  }
  func.func @transform_1(%arg0: i32) -> (i32, i32) {
    %c0_i32 = arith.constant 0 : i32
    %c0_i32_0 = arith.constant 0 : i32
    %c0_i32_1 = arith.constant 0 : i32
    return %c0_i32, %c0_i32_0 : i32, i32
  }
  func.func @transform_2(%arg0: i32) -> (i32, i32) {
    %c0_i32 = arith.constant 0 : i32
    %c0_i32_0 = arith.constant 0 : i32
    %c0_i32_1 = arith.constant 0 : i32
    return %c0_i32, %c0_i32_0 : i32, i32
  }
  func.func @transform_3(%arg0: i32) -> (i32, i32) {
    %c0_i32 = arith.constant 0 : i32
    %c0_i32_0 = arith.constant 0 : i32
    %c0_i32_1 = arith.constant 0 : i32
    return %c0_i32, %c0_i32_0 : i32, i32
  }
  func.func @transform_4(%arg0: i32) -> (i32, i32) {
    %c0_i32 = arith.constant 0 : i32
    %c0_i32_0 = arith.constant 0 : i32
    %c0_i32_1 = arith.constant 0 : i32
    return %c0_i32, %c0_i32_0 : i32, i32
  }
  func.func @transform_5(%arg0: i32) -> (i32, i32) {
    %c0_i32 = arith.constant 0 : i32
    %c0_i32_0 = arith.constant 0 : i32
    %c0_i32_1 = arith.constant 0 : i32
    return %c0_i32, %c0_i32_0 : i32, i32
  }
  func.func @transform_6(%arg0: i32) -> (i32, i32, i32) {
    %c0_i32 = arith.constant 0 : i32
    %c0_i32_0 = arith.constant 0 : i32
    %c0_i32_1 = arith.constant 0 : i32
    return %arg0, %c0_i32, %c0_i32_0 : i32, i32, i32
  }
}

</mosaic_0001>

<llo_original>
// kernel: tpu_custom_call.1
$region0: #{tpu_custom_call.1}
  #allocation0 [shape = 'u32[]', space=smem, size = 0x4, offset = 0x4, fixed_abs, tag = 'smem constant byte address 0x4 - core index']
  #allocation1 [shape = 'u32[144,128]{1,0:T(1,128)}', space=vmem, size = 0x12000, scoped, tag = 'internal scratch']
  #allocation2 [shape = 'bf16[32,128]{1,0:T(16,128)(2,1)}', space=vmem, size = 0x2000, scoped, tag = 'scratch operand']
  %s0 = inlined_call_operand.hbm [shape: f32[2,16,128], index: 0, kind: input, shape index: {}]
  %s1 = inlined_call_operand.hbm [shape: bf16[128,384], index: 1, kind: input, shape index: {}]
  %s2 = inlined_call_operand.hbm [shape: bf16[128,128], index: 2, kind: input, shape index: {}]
  %s3 = inlined_call_operand.hbm [shape: bf16[128,256], index: 3, kind: input, shape index: {}]
  %s4 = inlined_call_operand.hbm [shape: bf16[256,128], index: 4, kind: input, shape index: {}]
  %s5 = inlined_call_operand.vmem [shape: f32[13,128], index: 5, kind: input, shape index: {}]
  %s6 = inlined_call_operand.hbm [shape: f32[2,16,128], index: 6, kind: output, shape index: {}]
  %s7 = sld [smem:[#allocation0]]
  $region54: #{tpu_custom_call.1} parent=0
    _
  %s9 = ssub.s32 1, %s7
  %s10 = scalar_select 0, %s9, %s7
  $region1: #{tpu_custom_call.1} parent=0
    #allocation3 [shape = 'u8[16384]{0}', space=vmem, size = 0x4000, scoped, tag = 'input window, operand 0, single buffered']
    #allocation4 [shape = 's32[1]{0}', space=sflag, size = 0x4, scoped, tag = 'scoped memory for tpu_custom_call.1']
    #allocation5 [shape = 's32[1]{0}', space=sflag, size = 0x4, scoped, tag = 'scoped memory for tpu_custom_call.1']
    #allocation6 [shape = 'u8[98304]{0}', space=vmem, size = 0x18000, scoped, tag = 'input window, operand 1, single buffered']
    #allocation7 [shape = 's32[1]{0}', space=sflag, size = 0x4, scoped, tag = 'scoped memory for tpu_custom_call.1']
    #allocation8 [shape = 'u8[32768]{0}', space=vmem, size = 0x8000, scoped, tag = 'input window, operand 2, single buffered']
    #allocation9 [shape = 'u8[65536]{0}', space=vmem, size = 0x10000, scoped, tag = 'input window, operand 3, single buffered']
    #allocation10 [shape = 's32[1]{0}', space=sflag, size = 0x4, scoped, tag = 'scoped memory for tpu_custom_call.1']
    #allocation11 [shape = 'u8[65536]{0}', space=vmem, size = 0x10000, scoped, tag = 'input window, operand 4, single buffered']
    #allocation12 [shape = 'u8[16384]{0}', space=vmem, size = 0x4000, scoped, tag = 'output window, operand 0, single buffered']
    %11 = vsyncpa [#allocation4], 0
    %12 = vsyncpa [#allocation7], 0
    %13 = vsyncpa [#allocation10], 0
    %14 = vsyncpa [#allocation5], 0
    // Predicated region
    $region2: #{tpu_custom_call.1} parent=1 // pred_check
      _
    $region3: #{tpu_custom_call.1} parent=1 // pred_check_branch
      %16 = sbr.rel (0) target = $region5
    $region4: #{tpu_custom_call.1} parent=1 // pred_region
      %s18 = ssub.s32 512, 512
      %19 = vsyncadd [#allocation4], %s18
      %s20 = sshll.u32 [#allocation3], 4
      %s21 = int_to_ptr.vmem [resolvable:$true] %s20
      %26 = dma.hbm_to_vmem [thread:$0]  %s0, 512, %s21, [#allocation4], 128, 128, 8
    $region5: #{tpu_custom_call.1} parent=1 // pred_fallthru
      _
    // Predicated region
    $region6: #{tpu_custom_call.1} parent=1 // pred_check
      _
    $region7: #{tpu_custom_call.1} parent=1 // pred_check_branch
      %28 = sbr.rel (0) target = $region9
    $region8: #{tpu_custom_call.1} parent=1 // pred_region
      %s30 = ssub.s32 3072, 3072
      %31 = vsyncadd [#allocation7], %s30
      %s32 = sshll.u32 [#allocation6], 4
      %s33 = int_to_ptr.vmem [resolvable:$true] %s32
      %38 = dma.hbm_to_vmem [thread:$0]  %s1, 3072, %s33, [#allocation7], 192, 192, 12
    $region9: #{tpu_custom_call.1} parent=1 // pred_fallthru
      _
    // Predicated region
    $region10: #{tpu_custom_call.1} parent=1 // pred_check
      _
    $region11: #{tpu_custom_call.1} parent=1 // pred_check_branch
      %40 = sbr.rel (0) target = $region13
    $region12: #{tpu_custom_call.1} parent=1 // pred_region
      %s42 = ssub.s32 1024, 1024
      %43 = vsyncadd [#allocation7], %s42
      %s44 = sshll.u32 [#allocation8], 4
      %s45 = int_to_ptr.vmem [resolvable:$true] %s44
      %50 = dma.hbm_to_vmem [thread:$0]  %s2, 1024, %s45, [#allocation7], 64, 64, 4
    $region13: #{tpu_custom_call.1} parent=1 // pred_fallthru
      _
    // Predicated region
    $region14: #{tpu_custom_call.1} parent=1 // pred_check
      _
    $region15: #{tpu_custom_call.1} parent=1 // pred_check_branch
      %52 = sbr.rel (0) target = $region17
    $region16: #{tpu_custom_call.1} parent=1 // pred_region
      %s54 = ssub.s32 2048, 2048
      %55 = vsyncadd [#allocation10], %s54
      %s56 = sshll.u32 [#allocation9], 4
      %s57 = int_to_ptr.vmem [resolvable:$true] %s56
      %62 = dma.hbm_to_vmem [thread:$0]  %s3, 2048, %s57, [#allocation10], 128, 128, 8
    $region17: #{tpu_custom_call.1} parent=1 // pred_fallthru
      _
    // Predicated region
    $region18: #{tpu_custom_call.1} parent=1 // pred_check
      _
    $region19: #{tpu_custom_call.1} parent=1 // pred_check_branch
      %64 = sbr.rel (0) target = $region21
    $region20: #{tpu_custom_call.1} parent=1 // pred_region
      %s66 = ssub.s32 2048, 2048
      %67 = vsyncadd [#allocation10], %s66
      %s68 = sshll.u32 [#allocation11], 4
      %s69 = int_to_ptr.vmem [resolvable:$true] %s68
      %74 = dma.hbm_to_vmem [thread:$0]  %s4, 2048, %s69, [#allocation10], 64, 64, 4
    $region21: #{tpu_custom_call.1} parent=1 // pred_fallthru
      _
    // Predicated region
    $region22: #{tpu_custom_call.1} parent=1 // pred_check
      _
    $region23: #{tpu_custom_call.1} parent=1 // pred_check_branch
      %76 = sbr.rel (0) target = $region25
    $region24: #{tpu_custom_call.1} parent=1 // pred_region
      _
    $region25: #{tpu_custom_call.1} parent=1 // pred_fallthru
      _
    // Predicated region
    $region26: #{tpu_custom_call.1} parent=1 // pred_check
      _
    $region27: #{tpu_custom_call.1} parent=1 // pred_check_branch
      %78 = sbr.rel (0) target = $region29
    $region28: #{tpu_custom_call.1} parent=1 // pred_region
      %79 = dma.done [#allocation4], 512
    $region29: #{tpu_custom_call.1} parent=1 // pred_fallthru
      _
    // Predicated region
    $region30: #{tpu_custom_call.1} parent=1 // pred_check
      _
    $region31: #{tpu_custom_call.1} parent=1 // pred_check_branch
      %81 = sbr.rel (0) target = $region33
    $region32: #{tpu_custom_call.1} parent=1 // pred_region
      %82 = dma.done [#allocation7], 3072
    $region33: #{tpu_custom_call.1} parent=1 // pred_fallthru
      _
    // Predicated region
    $region34: #{tpu_custom_call.1} parent=1 // pred_check
      _
    $region35: #{tpu_custom_call.1} parent=1 // pred_check_branch
      %84 = sbr.rel (0) target = $region37
    $region36: #{tpu_custom_call.1} parent=1 // pred_region
      %85 = dma.done [#allocation7], 1024
    $region37: #{tpu_custom_call.1} parent=1 // pred_fallthru
      _
    // Predicated region
    $region38: #{tpu_custom_call.1} parent=1 // pred_check
      _
    $region39: #{tpu_custom_call.1} parent=1 // pred_check_branch
      %87 = sbr.rel (0) target = $region41
    $region40: #{tpu_custom_call.1} parent=1 // pred_region
      %88 = dma.done [#allocation10], 2048
    $region41: #{tpu_custom_call.1} parent=1 // pred_fallthru
      _
    // Predicated region
    $region42: #{tpu_custom_call.1} parent=1 // pred_check
      _
    $region43: #{tpu_custom_call.1} parent=1 // pred_check_branch
      %90 = sbr.rel (0) target = $region45
    $region44: #{tpu_custom_call.1} parent=1 // pred_region
      %91 = dma.done [#allocation10], 2048
    $region45: #{tpu_custom_call.1} parent=1 // pred_fallthru
      _
    %v93 = vld [vmem:[#allocation3] sm:$0xff]
    %v94 = vld [vmem:[#allocation3 + $0x8] sm:$0xff]
    %v95 = vld [vmem:[#allocation3 + $0x10] sm:$0xff]
    %v96 = vld [vmem:[#allocation3 + $0x18] sm:$0xff]
    %v97 = vld [vmem:[%s5] sm:$0xff]
    %v98 = vld [vmem:[%s5 + $0x8] sm:$0x1f]
    %v100 = vrot.slane %v97, 1
    %v102 = vrot.slane %v97, 2
    %v104 = vpack.c.bf16 %v94, %v93
    %v105 = vpack.c.bf16 %v96, %v95
    %v106 = vld [vmem:[#allocation6] sm:$0xff]
    %v107 = vld [vmem:[#allocation6 + $0x8] sm:$0xf]
    %v108 = vld [vmem:[#allocation6 + $0xc] sm:$0xff]
    %v109 = vld [vmem:[#allocation6 + $0x14] sm:$0xf]
    %v110 = vld [vmem:[#allocation6 + $0x18] sm:$0xff]
    %v111 = vld [vmem:[#allocation6 + $0x20] sm:$0xf]
    %v112 = vld [vmem:[#allocation6 + $0x24] sm:$0xff]
    %v113 = vld [vmem:[#allocation6 + $0x2c] sm:$0xf]
    %v114 = vld [vmem:[#allocation6 + $0x30] sm:$0xff]
    %v115 = vld [vmem:[#allocation6 + $0x38] sm:$0xf]
    %v116 = vld [vmem:[#allocation6 + $0x3c] sm:$0xff]
    %v117 = vld [vmem:[#allocation6 + $0x44] sm:$0xf]
    %v118 = vld [vmem:[#allocation6 + $0x48] sm:$0xff]
    %v119 = vld [vmem:[#allocation6 + $0x50] sm:$0xf]
    %v120 = vld [vmem:[#allocation6 + $0x54] sm:$0xff]
    %v121 = vld [vmem:[#allocation6 + $0x5c] sm:$0xf]
    %v122 = vld [vmem:[#allocation6 + $0x60] sm:$0xff]
    %v123 = vld [vmem:[#allocation6 + $0x68] sm:$0xf]
    %v124 = vld [vmem:[#allocation6 + $0x6c] sm:$0xff]
    %v125 = vld [vmem:[#allocation6 + $0x74] sm:$0xf]
    %v126 = vld [vmem:[#allocation6 + $0x78] sm:$0xff]
    %v127 = vld [vmem:[#allocation6 + $0x80] sm:$0xf]
    %v128 = vld [vmem:[#allocation6 + $0x84] sm:$0xff]
    %v129 = vld [vmem:[#allocation6 + $0x8c] sm:$0xf]
    %v130 = vld [vmem:[#allocation6 + $0x90] sm:$0xff]
    %v131 = vld [vmem:[#allocation6 + $0x98] sm:$0xf]
    %v132 = vld [vmem:[#allocation6 + $0x9c] sm:$0xff]
    %v133 = vld [vmem:[#allocation6 + $0xa4] sm:$0xf]
    %v134 = vld [vmem:[#allocation6 + $0xa8] sm:$0xff]
    %v135 = vld [vmem:[#allocation6 + $0xb0] sm:$0xf]
    %v136 = vld [vmem:[#allocation6 + $0xb4] sm:$0xff]
    %v137 = vld [vmem:[#allocation6 + $0xbc] sm:$0xf]
    %v138 = vlaneseq
    %v139 = vshrl.u32 %v138, 7
    %v140 = vsub.s32 0, %v139
    %v141 = vrot.slane %v97, %v140
    %v142 = vlaneseq
    %v143 = vshrl.u32 %v142, 7
    %v144 = vsub.s32 0, %v143
    %v145 = vrot.slane %v100, %v144
    %v146 = vlaneseq
    %v147 = vshrl.u32 %v146, 7
    %v148 = vsub.s32 0, %v147
    %v149 = vrot.slane %v102, %v148
    %v182 = vunpack.c.l.b16 %v106
    %v183 = vunpack.c.h.b16 %v106
    %v184 = vunpack.c.l.b16 %v107
    %v185 = vunpack.c.l.b16 %v108
    %v186 = vunpack.c.h.b16 %v108
    %v187 = vunpack.c.l.b16 %v109
    %v188 = vunpack.c.l.b16 %v110
    %v189 = vunpack.c.h.b16 %v110
    %v190 = vunpack.c.l.b16 %v111
    %v191 = vunpack.c.l.b16 %v112
    %v192 = vunpack.c.h.b16 %v112
    %v193 = vunpack.c.l.b16 %v113
    %v194 = vunpack.c.l.b16 %v114
    %v195 = vunpack.c.h.b16 %v114
    %v196 = vunpack.c.l.b16 %v115
    %v197 = vunpack.c.l.b16 %v116
    %v198 = vunpack.c.h.b16 %v116
    %v199 = vunpack.c.l.b16 %v117
    %v200 = vunpack.c.l.b16 %v118
    %v201 = vunpack.c.h.b16 %v118
    %v202 = vunpack.c.l.b16 %v119
    %v203 = vunpack.c.l.b16 %v120
    %v204 = vunpack.c.h.b16 %v120
    %v205 = vunpack.c.l.b16 %v121
    %v206 = vunpack.c.l.b16 %v122
    %v207 = vunpack.c.h.b16 %v122
    %v208 = vunpack.c.l.b16 %v123
    %v209 = vunpack.c.l.b16 %v124
    %v210 = vunpack.c.h.b16 %v124
    %v211 = vunpack.c.l.b16 %v125
    %v212 = vunpack.c.l.b16 %v126
    %v213 = vunpack.c.h.b16 %v126
    %v214 = vunpack.c.l.b16 %v127
    %v215 = vunpack.c.l.b16 %v128
    %v216 = vunpack.c.h.b16 %v128
    %v217 = vunpack.c.l.b16 %v129
    %v218 = vunpack.c.l.b16 %v130
    %v219 = vunpack.c.h.b16 %v130
    %v220 = vunpack.c.l.b16 %v131
    %v221 = vunpack.c.l.b16 %v132
    %v222 = vunpack.c.h.b16 %v132
    %v223 = vunpack.c.l.b16 %v133
    %v224 = vunpack.c.l.b16 %v134
    %v225 = vunpack.c.h.b16 %v134
    %v226 = vunpack.c.l.b16 %v135
    %v227 = vunpack.c.l.b16 %v136
    %v228 = vunpack.c.h.b16 %v136
    %v229 = vunpack.c.l.b16 %v137
    %v230 = vpack.c.b16 %v185, %v182
    %v231 = vpack.c.b16 %v186, %v183
    %v232 = vpack.c.b16 %v187, %v184
    %v233 = vpack.c.b16 %v191, %v188
    %v234 = vpack.c.b16 %v192, %v189
    %v235 = vpack.c.b16 %v193, %v190
    %v236 = vpack.c.b16 %v197, %v194
    %v237 = vpack.c.b16 %v198, %v195
    %v238 = vpack.c.b16 %v199, %v196
    %v239 = vpack.c.b16 %v203, %v200
    %v240 = vpack.c.b16 %v204, %v201
    %v241 = vpack.c.b16 %v205, %v202
    %v242 = vpack.c.b16 %v209, %v206
    %v243 = vpack.c.b16 %v210, %v207
    %v244 = vpack.c.b16 %v211, %v208
    %v245 = vpack.c.b16 %v215, %v212
    %v246 = vpack.c.b16 %v216, %v213
    %v247 = vpack.c.b16 %v217, %v214
    %v248 = vpack.c.b16 %v221, %v218
    %v249 = vpack.c.b16 %v222, %v219
    %v250 = vpack.c.b16 %v223, %v220
    %v251 = vpack.c.b16 %v227, %v224
    %v252 = vpack.c.b16 %v228, %v225
    %v253 = vpack.c.b16 %v229, %v226
    %278 = vmatprep.subr.bf16.mxu0 %v231
    %279 = vmatpush1.bf16.msra.mxu0 %v230
    %280 = vmatprep.subr.bf16.mxu0 %v234
    %281 = vmatpush1.bf16.msra.mxu0 %v233
    %282 = vmatprep.subr.bf16.mxu0 %v237
    %283 = vmatpush1.bf16.msra.mxu0 %v236
    %284 = vmatprep.subr.bf16.mxu0 %v240
    %285 = vmatpush1.bf16.msra.mxu0 %v239
    %286 = vmatprep.subr.bf16.mxu0 %v243
    %287 = vmatpush1.bf16.msra.mxu0 %v242
    %288 = vmatprep.subr.bf16.mxu0 %v246
    %289 = vmatpush1.bf16.msra.mxu0 %v245
    %290 = vmatprep.subr.bf16.mxu0 %v249
    %291 = vmatpush1.bf16.msra.mxu0 %v248
    %292 = vmatprep.subr.bf16.mxu0 %v252
    %293 = vmatpush1.bf16.msra.mxu0 %v251
    %294 = vmatprep.subr.bf16.mxu0 0
    %295 = vmatpush1.bf16.msra.mxu0 0
    %296 = vmatprep.subr.bf16.mxu0 0
    %297 = vmatpush1.bf16.msra.mxu0 0
    %298 = vmatprep.subr.bf16.mxu0 0
    %299 = vmatpush1.bf16.msra.mxu0 0
    %300 = vmatprep.subr.bf16.mxu0 0
    %301 = vmatpush1.bf16.msra.mxu0 0
    %302 = vmatprep.subr.bf16.mxu0 0
    %303 = vmatpush1.bf16.msra.mxu0 0
    %304 = vmatprep.subr.bf16.mxu0 0
    %305 = vmatpush1.bf16.msra.mxu0 0
    %306 = vmatprep.subr.bf16.mxu0 0
    %307 = vmatpush1.bf16.msra.mxu0 0
    %308 = vmatprep.subr.bf16.mxu0 0
    %309 = vmatpush1.bf16.msra.mxu0 0
    %310 = vmatprep.mubr.bf16.mxu0 0
    %311 = vmatmul.mubr.bf16.gmra.mrb[0].mxu0 %v104
    %v312 = vpop.f32.mrb[0].mxu0
    %v313 = vadd.f32 %v141, %v312
    %v314 = vpop.f32.mrb[0].mxu0
    %v315 = vadd.f32 %v145, %v314
    %v316 = vpop.f32.mrb[0].mxu0
    %v317 = vadd.f32 %v141, %v316
    %v318 = vpop.f32.mrb[0].mxu0
    %v319 = vadd.f32 %v145, %v318
    %320 = vmatprep.mubr.bf16.mxu0 0
    %321 = vmatmul.mubr.bf16.gmra.mrb[0].mxu0 %v105
    %v322 = vpop.f32.mrb[0].mxu0
    %v323 = vadd.f32 %v141, %v322
    %v324 = vpop.f32.mrb[0].mxu0
    %v325 = vadd.f32 %v145, %v324
    %v326 = vpop.f32.mrb[0].mxu0
    %v327 = vadd.f32 %v141, %v326
    %v328 = vpop.f32.mrb[0].mxu0
    %v329 = vadd.f32 %v145, %v328
    %330 = vdwg.mxu0
    %331 = vmatprep.subr.bf16.mxu0 0
    %332 = vmatpush1.bf16.msra.mxu0 %v232
    %333 = vmatprep.subr.bf16.mxu0 0
    %334 = vmatpush1.bf16.msra.mxu0 %v235
    %335 = vmatprep.subr.bf16.mxu0 0
    %336 = vmatpush1.bf16.msra.mxu0 %v238
    %337 = vmatprep.subr.bf16.mxu0 0
    %338 = vmatpush1.bf16.msra.mxu0 %v241
    %339 = vmatprep.subr.bf16.mxu0 0
    %340 = vmatpush1.bf16.msra.mxu0 %v244
    %341 = vmatprep.subr.bf16.mxu0 0
    %342 = vmatpush1.bf16.msra.mxu0 %v247
    %343 = vmatprep.subr.bf16.mxu0 0
    %344 = vmatpush1.bf16.msra.mxu0 %v250
    %345 = vmatprep.subr.bf16.mxu0 0
    %346 = vmatpush1.bf16.msra.mxu0 %v253
    %347 = vmatprep.subr.bf16.mxu0 0
    %348 = vmatpush1.bf16.msra.mxu0 0
    %349 = vmatprep.subr.bf16.mxu0 0
    %350 = vmatpush1.bf16.msra.mxu0 0
    %351 = vmatprep.subr.bf16.mxu0 0
    %352 = vmatpush1.bf16.msra.mxu0 0
    %353 = vmatprep.subr.bf16.mxu0 0
    %354 = vmatpush1.bf16.msra.mxu0 0
    %355 = vmatprep.subr.bf16.mxu0 0
    %356 = vmatpush1.bf16.msra.mxu0 0
    %357 = vmatprep.subr.bf16.mxu0 0
    %358 = vmatpush1.bf16.msra.mxu0 0
    %359 = vmatprep.subr.bf16.mxu0 0
    %360 = vmatpush1.bf16.msra.mxu0 0
    %361 = vmatprep.subr.bf16.mxu0 0
    %362 = vmatpush1.bf16.msra.mxu0 0
    %363 = vmatprep.mubr.bf16.mxu0 0
    %364 = vmatmul.mubr.bf16.gmra.mrb[0].mxu0 %v104
    %v365 = vpop.f32.mrb[0].mxu0
    %v366 = vadd.f32 %v149, %v365
    %v367 = vpop.f32.mrb[0].mxu0
    %v368 = vpop.f32.mrb[0].mxu0
    %v369 = vadd.f32 %v149, %v368
    %v370 = vpop.f32.mrb[0].mxu0
    %371 = vmatprep.mubr.bf16.mxu0 0
    %372 = vmatmul.mubr.bf16.gmra.mrb[0].mxu0 %v105
    %v373 = vpop.f32.mrb[0].mxu0
    %v374 = vadd.f32 %v149, %v373
    %v375 = vpop.f32.mrb[0].mxu0
    %v376 = vpop.f32.mrb[0].mxu0
    %v377 = vadd.f32 %v149, %v376
    %v378 = vpop.f32.mrb[0].mxu0
    %379 = vdwg.mxu0
    %v380 = vld [vmem:[#allocation8] sm:$0xf]
    %v381 = vld [vmem:[#allocation8 + $0x4] sm:$0xf]
    %v382 = vld [vmem:[#allocation8 + $0x8] sm:$0xf]
    %v383 = vld [vmem:[#allocation8 + $0xc] sm:$0xf]
    %v384 = vld [vmem:[#allocation8 + $0x10] sm:$0xf]
    %v385 = vld [vmem:[#allocation8 + $0x14] sm:$0xf]
    %v386 = vld [vmem:[#allocation8 + $0x18] sm:$0xf]
    %v387 = vld [vmem:[#allocation8 + $0x1c] sm:$0xf]
    %v388 = vld [vmem:[#allocation8 + $0x20] sm:$0xf]
    %v389 = vld [vmem:[#allocation8 + $0x24] sm:$0xf]
    %v390 = vld [vmem:[#allocation8 + $0x28] sm:$0xf]
    %v391 = vld [vmem:[#allocation8 + $0x2c] sm:$0xf]
    %v392 = vld [vmem:[#allocation8 + $0x30] sm:$0xf]
    %v393 = vld [vmem:[#allocation8 + $0x34] sm:$0xf]
    %v394 = vld [vmem:[#allocation8 + $0x38] sm:$0xf]
    %v395 = vld [vmem:[#allocation8 + $0x3c] sm:$0xf]
    %v396 = vld [vmem:[#allocation9] sm:$0xff]
    %v397 = vld [vmem:[#allocation9 + $0x8] sm:$0xff]
    %v398 = vld [vmem:[#allocation9 + $0x10] sm:$0xff]
    %v399 = vld [vmem:[#allocation9 + $0x18] sm:$0xff]
    %v400 = vld [vmem:[#allocation9 + $0x20] sm:$0xff]
    %v401 = vld [vmem:[#allocation9 + $0x28] sm:$0xff]
    %v402 = vld [vmem:[#allocation9 + $0x30] sm:$0xff]
    %v403 = vld [vmem:[#allocation9 + $0x38] sm:$0xff]
    %v404 = vld [vmem:[#allocation9 + $0x40] sm:$0xff]
    %v405 = vld [vmem:[#allocation9 + $0x48] sm:$0xff]
    %v406 = vld [vmem:[#allocation9 + $0x50] sm:$0xff]
    %v407 = vld [vmem:[#allocation9 + $0x58] sm:$0xff]
    %v408 = vld [vmem:[#allocation9 + $0x60] sm:$0xff]
    %v409 = vld [vmem:[#allocation9 + $0x68] sm:$0xff]
    %v410 = vld [vmem:[#allocation9 + $0x70] sm:$0xff]
    %v411 = vld [vmem:[#allocation9 + $0x78] sm:$0xff]
    %v412 = vld [vmem:[#allocation11] sm:$0xf]
    %v413 = vld [vmem:[#allocation11 + $0x4] sm:$0xf]
    %v414 = vld [vmem:[#allocation11 + $0x8] sm:$0xf]
    %v415 = vld [vmem:[#allocation11 + $0xc] sm:$0xf]
    %v416 = vld [vmem:[#allocation11 + $0x10] sm:$0xf]
    %v417 = vld [vmem:[#allocation11 + $0x14] sm:$0xf]
    %v418 = vld [vmem:[#allocation11 + $0x18] sm:$0xf]
    %v419 = vld [vmem:[#allocation11 + $0x1c] sm:$0xf]
    %v420 = vld [vmem:[#allocation11 + $0x20] sm:$0xf]
    %v421 = vld [vmem:[#allocation11 + $0x24] sm:$0xf]
    %v422 = vld [vmem:[#allocation11 + $0x28] sm:$0xf]
    %v423 = vld [vmem:[#allocation11 + $0x2c] sm:$0xf]
    %v424 = vld [vmem:[#allocation11 + $0x30] sm:$0xf]
    %v425 = vld [vmem:[#allocation11 + $0x34] sm:$0xf]
    %v426 = vld [vmem:[#allocation11 + $0x38] sm:$0xf]
    %v427 = vld [vmem:[#allocation11 + $0x3c] sm:$0xf]
    %v428 = vld [vmem:[#allocation11 + $0x40] sm:$0xf]
    %v429 = vld [vmem:[#allocation11 + $0x44] sm:$0xf]
    %v430 = vld [vmem:[#allocation11 + $0x48] sm:$0xf]
    %v431 = vld [vmem:[#allocation11 + $0x4c] sm:$0xf]
    %v432 = vld [vmem:[#allocation11 + $0x50] sm:$0xf]
    %v433 = vld [vmem:[#allocation11 + $0x54] sm:$0xf]
    %v434 = vld [vmem:[#allocation11 + $0x58] sm:$0xf]
    %v435 = vld [vmem:[#allocation11 + $0x5c] sm:$0xf]
    %v436 = vld [vmem:[#allocation11 + $0x60] sm:$0xf]
    %v437 = vld [vmem:[#allocation11 + $0x64] sm:$0xf]
    %v438 = vld [vmem:[#allocation11 + $0x68] sm:$0xf]
    %v439 = vld [vmem:[#allocation11 + $0x6c] sm:$0xf]
    %v440 = vld [vmem:[#allocation11 + $0x70] sm:$0xf]
    %v441 = vld [vmem:[#allocation11 + $0x74] sm:$0xf]
    %v442 = vld [vmem:[#allocation11 + $0x78] sm:$0xf]
    %v443 = vld [vmem:[#allocation11 + $0x7c] sm:$0xf]
    %v444 = vpack.c.bf16 %v317, %v313
    %v445 = vpack.c.bf16 %v319, %v315
    %v446 = vpack.c.bf16 %v369, %v366
    %vm447 = vcmask 261120
    %v449 = vsel %vm447, %v444, 0
    %v452 = vsel %vm447, %v445, 0
    %454 = vmatprep.subr.bf16.mxu0 0
    %455 = vmatpush1.bf16.xpose.msra.mxu0 %v452
    %456 = vmatprep.subr.bf16.mxu0 0
    %457 = vmatpush1.bf16.xpose.msra.mxu0 0
    %458 = vmatprep.subr.bf16.mxu0 0
    %459 = vmatpush1.bf16.xpose.msra.mxu0 0
    %460 = vmatprep.subr.bf16.mxu0 0
    %461 = vmatpush1.bf16.xpose.msra.mxu0 0
    %462 = vmatprep.subr.bf16.mxu0 0
    %463 = vmatpush1.bf16.xpose.msra.mxu0 0
    %464 = vmatprep.subr.bf16.mxu0 0
    %465 = vmatpush1.bf16.xpose.msra.mxu0 0
    %466 = vmatprep.subr.bf16.mxu0 0
    %467 = vmatpush1.bf16.xpose.msra.mxu0 0
    %468 = vmatprep.subr.bf16.mxu0 0
    %469 = vmatpush1.bf16.xpose.msra.mxu0 0
    %470 = vmatprep.subr.bf16.mxu0 0
    %471 = vmatpush1.bf16.xpose.msra.mxu0 0
    %472 = vmatprep.subr.bf16.mxu0 0
    %473 = vmatpush1.bf16.xpose.msra.mxu0 0
    %474 = vmatprep.subr.bf16.mxu0 0
    %475 = vmatpush1.bf16.xpose.msra.mxu0 0
    %476 = vmatprep.subr.bf16.mxu0 0
    %477 = vmatpush1.bf16.xpose.msra.mxu0 0
    %478 = vmatprep.subr.bf16.mxu0 0
    %479 = vmatpush1.bf16.xpose.msra.mxu0 0
    %480 = vmatprep.subr.bf16.mxu0 0
    %481 = vmatpush1.bf16.xpose.msra.mxu0 0
    %482 = vmatprep.subr.bf16.mxu0 0
    %483 = vmatpush1.bf16.xpose.msra.mxu0 0
    %484 = vmatprep.subr.bf16.mxu0 0
    %485 = vmatpush1.bf16.xpose.msra.mxu0 0
    %486 = vmatprep.mubr.bf16.mxu0 0
    %487 = vmatmul.mubr.bf16.gmra.mrb[0].mxu0 %v449
    %v488 = vpop.f32.mrb[0].mxu0
    %v489 = vadd.f32 0.0, %v488
    %v490 = vpop.f32.mrb[0].mxu0
    %v491 = vpop.f32.mrb[0].mxu0
    %v492 = vadd.f32 0.0, %v491
    %v493 = vpop.f32.mrb[0].mxu0
    %494 = vdwg.mxu0
    %vm495 = vcmask 130048
    %v496 = vsel %vm495, %v489, -inf
    %497 = vmax.xlane.f32.xlu0 %v496
    %v498 = vpop.xlane.xlu0 %497
    %v499 = vsel %vm495, %v492, -inf
    %500 = vmax.xlane.f32.xlu0 %v499
    %v501 = vpop.xlane.xlu0 %500
    %v502 = vsub.f32 %v489, %v498
    %v503 = vsub.f32 %v492, %v501
    %v504 = vmul.f32 %v502, 1.442695
    %v505 = vpow.pop %v504
    %v506 = vmul.f32 %v503, 1.442695
    %v507 = vpow.pop %v506
    %v508 = vsel %vm495, %v505, 0.0
    %509 = vadd.xlane.f32.xlu0 %v508
    %v510 = vpop.xlane.xlu0 %509
    %v511 = vsel %vm495, %v507, 0.0
    %512 = vadd.xlane.f32.xlu0 %v511
    %v513 = vpop.xlane.xlu0 %512
    %v514 = vrcp.pop %v510
    %v515 = vrcp.pop %v513
    %v516 = vpack.c.bf16 %v507, %v505
    %v518 = vsel %vm495, %v516, 0
    %520 = vmatprep.subr.bf16.mxu0 0
    %521 = vmatpush1.bf16.msra.mxu0 %v446
    %522 = vmatprep.subr.bf16.mxu0 0
    %523 = vmatpush1.bf16.msra.mxu0 0
    %524 = vmatprep.subr.bf16.mxu0 0
    %525 = vmatpush1.bf16.msra.mxu0 0
    %526 = vmatprep.subr.bf16.mxu0 0
    %527 = vmatpush1.bf16.msra.mxu0 0
    %528 = vmatprep.subr.bf16.mxu0 0
    %529 = vmatpush1.bf16.msra.mxu0 0
    %530 = vmatprep.subr.bf16.mxu0 0
    %531 = vmatpush1.bf16.msra.mxu0 0
    %532 = vmatprep.subr.bf16.mxu0 0
    %533 = vmatpush1.bf16.msra.mxu0 0
    %534 = vmatprep.subr.bf16.mxu0 0
    %535 = vmatpush1.bf16.msra.mxu0 0
    %536 = vmatprep.subr.bf16.mxu0 0
    %537 = vmatpush1.bf16.msra.mxu0 0
    %538 = vmatprep.subr.bf16.mxu0 0
    %539 = vmatpush1.bf16.msra.mxu0 0
    %540 = vmatprep.subr.bf16.mxu0 0
    %541 = vmatpush1.bf16.msra.mxu0 0
    %542 = vmatprep.subr.bf16.mxu0 0
    %543 = vmatpush1.bf16.msra.mxu0 0
    %544 = vmatprep.subr.bf16.mxu0 0
    %545 = vmatpush1.bf16.msra.mxu0 0
    %546 = vmatprep.subr.bf16.mxu0 0
    %547 = vmatpush1.bf16.msra.mxu0 0
    %548 = vmatprep.subr.bf16.mxu0 0
    %549 = vmatpush1.bf16.msra.mxu0 0
    %550 = vmatprep.subr.bf16.mxu0 0
    %551 = vmatpush1.bf16.msra.mxu0 0
    %552 = vmatprep.mubr.bf16.mxu0 0
    %553 = vmatmul.mubr.bf16.gmra.mrb[0].mxu0 %v518
    %v554 = vpop.f32.mrb[0].mxu0
    %v555 = vadd.f32 0.0, %v554
    %v556 = vpop.f32.mrb[0].mxu0
    %v557 = vpop.f32.mrb[0].mxu0
    %v558 = vadd.f32 0.0, %v557
    %v559 = vpop.f32.mrb[0].mxu0
    %560 = vdwg.mxu0
    %v561 = vmul.f32 %v555, %v514
    %v562 = vmul.f32 %v558, %v515
    %564 = vrot.lane.b32.xlu0 %v444, 96
    %v565 = vpop.permute.xlu0 %564
    %567 = vrot.lane.b32.xlu0 %v445, 96
    %v568 = vpop.permute.xlu0 %567
    %v570 = vsel %vm447, %v565, 0
    %v573 = vsel %vm447, %v568, 0
    %575 = vmatprep.subr.bf16.mxu0 0
    %576 = vmatpush1.bf16.xpose.msra.mxu0 %v573
    %577 = vmatprep.subr.bf16.mxu0 0
    %578 = vmatpush1.bf16.xpose.msra.mxu0 0
    %579 = vmatprep.subr.bf16.mxu0 0
    %580 = vmatpush1.bf16.xpose.msra.mxu0 0
    %581 = vmatprep.subr.bf16.mxu0 0
    %582 = vmatpush1.bf16.xpose.msra.mxu0 0
    %583 = vmatprep.subr.bf16.mxu0 0
    %584 = vmatpush1.bf16.xpose.msra.mxu0 0
    %585 = vmatprep.subr.bf16.mxu0 0
    %586 = vmatpush1.bf16.xpose.msra.mxu0 0
    %587 = vmatprep.subr.bf16.mxu0 0
    %588 = vmatpush1.bf16.xpose.msra.mxu0 0
    %589 = vmatprep.subr.bf16.mxu0 0
    %590 = vmatpush1.bf16.xpose.msra.mxu0 0
    %591 = vmatprep.subr.bf16.mxu0 0
    %592 = vmatpush1.bf16.xpose.msra.mxu0 0
    %593 = vmatprep.subr.bf16.mxu0 0
    %594 = vmatpush1.bf16.xpose.msra.mxu0 0
    %595 = vmatprep.subr.bf16.mxu0 0
    %596 = vmatpush1.bf16.xpose.msra.mxu0 0
    %597 = vmatprep.subr.bf16.mxu0 0
    %598 = vmatpush1.bf16.xpose.msra.mxu0 0
    %599 = vmatprep.subr.bf16.mxu0 0
    %600 = vmatpush1.bf16.xpose.msra.mxu0 0
    %601 = vmatprep.subr.bf16.mxu0 0
    %602 = vmatpush1.bf16.xpose.msra.mxu0 0
    %603 = vmatprep.subr.bf16.mxu0 0
    %604 = vmatpush1.bf16.xpose.msra.mxu0 0
    %605 = vmatprep.subr.bf16.mxu0 0
    %606 = vmatpush1.bf16.xpose.msra.mxu0 0
    %607 = vmatprep.mubr.bf16.mxu0 0
    %608 = vmatmul.mubr.bf16.gmra.mrb[0].mxu0 %v570
    %v609 = vpop.f32.mrb[0].mxu0
    %v610 = vadd.f32 0.0, %v609
    %v611 = vpop.f32.mrb[0].mxu0
    %v612 = vpop.f32.mrb[0].mxu0
    %v613 = vadd.f32 0.0, %v612
    %v614 = vpop.f32.mrb[0].mxu0
    %615 = vdwg.mxu0
    %v616 = vsel %vm495, %v610, -inf
    %617 = vmax.xlane.f32.xlu0 %v616
    %v618 = vpop.xlane.xlu0 %617
    %v619 = vsel %vm495, %v613, -inf
    %620 = vmax.xlane.f32.xlu0 %v619
    %v621 = vpop.xlane.xlu0 %620
    %v622 = vsub.f32 %v610, %v618
    %v623 = vsub.f32 %v613, %v621
    %v624 = vmul.f32 %v622, 1.442695
    %v625 = vpow.pop %v624
    %v626 = vmul.f32 %v623, 1.442695
    %v627 = vpow.pop %v626
    %v628 = vsel %vm495, %v625, 0.0
    %629 = vadd.xlane.f32.xlu0 %v628
    %v630 = vpop.xlane.xlu0 %629
    %v631 = vsel %vm495, %v627, 0.0
    %632 = vadd.xlane.f32.xlu0 %v631
    %v633 = vpop.xlane.xlu0 %632
    %v634 = vrcp.pop %v630
    %v635 = vrcp.pop %v633
    %v636 = vpack.c.bf16 %v627, %v625
    %638 = vrot.lane.b32.xlu0 %v446, 96
    %v639 = vpop.permute.xlu0 %638
    %v642 = vsel %vm495, %v636, 0
    %644 = vmatprep.subr.bf16.mxu0 0
    %645 = vmatpush1.bf16.msra.mxu0 %v639
    %646 = vmatprep.subr.bf16.mxu0 0
    %647 = vmatpush1.bf16.msra.mxu0 0
    %648 = vmatprep.subr.bf16.mxu0 0
    %649 = vmatpush1.bf16.msra.mxu0 0
    %650 = vmatprep.subr.bf16.mxu0 0
    %651 = vmatpush1.bf16.msra.mxu0 0
    %652 = vmatprep.subr.bf16.mxu0 0
    %653 = vmatpush1.bf16.msra.mxu0 0
    %654 = vmatprep.subr.bf16.mxu0 0
    %655 = vmatpush1.bf16.msra.mxu0 0
    %656 = vmatprep.subr.bf16.mxu0 0
    %657 = vmatpush1.bf16.msra.mxu0 0
    %658 = vmatprep.subr.bf16.mxu0 0
    %659 = vmatpush1.bf16.msra.mxu0 0
    %660 = vmatprep.subr.bf16.mxu0 0
    %661 = vmatpush1.bf16.msra.mxu0 0
    %662 = vmatprep.subr.bf16.mxu0 0
    %663 = vmatpush1.bf16.msra.mxu0 0
    %664 = vmatprep.subr.bf16.mxu0 0
    %665 = vmatpush1.bf16.msra.mxu0 0
    %666 = vmatprep.subr.bf16.mxu0 0
    %667 = vmatpush1.bf16.msra.mxu0 0
    %668 = vmatprep.subr.bf16.mxu0 0
    %669 = vmatpush1.bf16.msra.mxu0 0
    %670 = vmatprep.subr.bf16.mxu0 0
    %671 = vmatpush1.bf16.msra.mxu0 0
    %672 = vmatprep.subr.bf16.mxu0 0
    %673 = vmatpush1.bf16.msra.mxu0 0
    %674 = vmatprep.subr.bf16.mxu0 0
    %675 = vmatpush1.bf16.msra.mxu0 0
    %676 = vmatprep.mubr.bf16.mxu0 0
    %677 = vmatmul.mubr.bf16.gmra.mrb[0].mxu0 %v642
    %v678 = vpop.f32.mrb[0].mxu0
    %v679 = vadd.f32 0.0, %v678
    %v680 = vpop.f32.mrb[0].mxu0
    %v681 = vpop.f32.mrb[0].mxu0
    %v682 = vadd.f32 0.0, %v681
    %v683 = vpop.f32.mrb[0].mxu0
    %684 = vdwg.mxu0
    %v685 = vmul.f32 %v679, %v634
    %v686 = vmul.f32 %v682, %v635
    %687 = vrot.lane.b32.xlu0 %v444, 64
    %v688 = vpop.permute.xlu0 %687
    %689 = vrot.lane.b32.xlu0 %v445, 64
    %v690 = vpop.permute.xlu0 %689
    %v692 = vsel %vm447, %v688, 0
    %v695 = vsel %vm447, %v690, 0
    %697 = vmatprep.subr.bf16.mxu0 0
    %698 = vmatpush1.bf16.xpose.msra.mxu0 %v695
    %699 = vmatprep.subr.bf16.mxu0 0
    %700 = vmatpush1.bf16.xpose.msra.mxu0 0
    %701 = vmatprep.subr.bf16.mxu0 0
    %702 = vmatpush1.bf16.xpose.msra.mxu0 0
    %703 = vmatprep.subr.bf16.mxu0 0
    %704 = vmatpush1.bf16.xpose.msra.mxu0 0
    %705 = vmatprep.subr.bf16.mxu0 0
    %706 = vmatpush1.bf16.xpose.msra.mxu0 0
    %707 = vmatprep.subr.bf16.mxu0 0
    %708 = vmatpush1.bf16.xpose.msra.mxu0 0
    %709 = vmatprep.subr.bf16.mxu0 0
    %710 = vmatpush1.bf16.xpose.msra.mxu0 0
    %711 = vmatprep.subr.bf16.mxu0 0
    %712 = vmatpush1.bf16.xpose.msra.mxu0 0
    %713 = vmatprep.subr.bf16.mxu0 0
    %714 = vmatpush1.bf16.xpose.msra.mxu0 0
    %715 = vmatprep.subr.bf16.mxu0 0
    %716 = vmatpush1.bf16.xpose.msra.mxu0 0
    %717 = vmatprep.subr.bf16.mxu0 0
    %718 = vmatpush1.bf16.xpose.msra.mxu0 0
    %719 = vmatprep.subr.bf16.mxu0 0
    %720 = vmatpush1.bf16.xpose.msra.mxu0 0
    %721 = vmatprep.subr.bf16.mxu0 0
    %722 = vmatpush1.bf16.xpose.msra.mxu0 0
    %723 = vmatprep.subr.bf16.mxu0 0
    %724 = vmatpush1.bf16.xpose.msra.mxu0 0
    %725 = vmatprep.subr.bf16.mxu0 0
    %726 = vmatpush1.bf16.xpose.msra.mxu0 0
    %727 = vmatprep.subr.bf16.mxu0 0
    %728 = vmatpush1.bf16.xpose.msra.mxu0 0
    %729 = vmatprep.mubr.bf16.mxu0 0
    %730 = vmatmul.mubr.bf16.gmra.mrb[0].mxu0 %v692
    %v731 = vpop.f32.mrb[0].mxu0
    %v732 = vadd.f32 0.0, %v731
    %v733 = vpop.f32.mrb[0].mxu0
    %v734 = vpop.f32.mrb[0].mxu0
    %v735 = vadd.f32 0.0, %v734
    %v736 = vpop.f32.mrb[0].mxu0
    %737 = vdwg.mxu0
    %v738 = vsel %vm495, %v732, -inf
    %739 = vmax.xlane.f32.xlu0 %v738
    %v740 = vpop.xlane.xlu0 %739
    %v741 = vsel %vm495, %v735, -inf
    %742 = vmax.xlane.f32.xlu0 %v741
    %v743 = vpop.xlane.xlu0 %742
    %v744 = vsub.f32 %v732, %v740
    %v745 = vsub.f32 %v735, %v743
    %v746 = vmul.f32 %v744, 1.442695
    %v747 = vpow.pop %v746
    %v748 = vmul.f32 %v745, 1.442695
    %v749 = vpow.pop %v748
    %v750 = vsel %vm495, %v747, 0.0
    %751 = vadd.xlane.f32.xlu0 %v750
    %v752 = vpop.xlane.xlu0 %751
    %v753 = vsel %vm495, %v749, 0.0
    %754 = vadd.xlane.f32.xlu0 %v753
    %v755 = vpop.xlane.xlu0 %754
    %v756 = vrcp.pop %v752
    %v757 = vrcp.pop %v755
    %v758 = vpack.c.bf16 %v749, %v747
    %759 = vrot.lane.b32.xlu0 %v446, 64
    %v760 = vpop.permute.xlu0 %759
    %v763 = vsel %vm495, %v758, 0
    %765 = vmatprep.subr.bf16.mxu0 0
    %766 = vmatpush1.bf16.msra.mxu0 %v760
    %767 = vmatprep.subr.bf16.mxu0 0
    %768 = vmatpush1.bf16.msra.mxu0 0
    %769 = vmatprep.subr.bf16.mxu0 0
    %770 = vmatpush1.bf16.msra.mxu0 0
    %771 = vmatprep.subr.bf16.mxu0 0
    %772 = vmatpush1.bf16.msra.mxu0 0
    %773 = vmatprep.subr.bf16.mxu0 0
    %774 = vmatpush1.bf16.msra.mxu0 0
    %775 = vmatprep.subr.bf16.mxu0 0
    %776 = vmatpush1.bf16.msra.mxu0 0
    %777 = vmatprep.subr.bf16.mxu0 0
    %778 = vmatpush1.bf16.msra.mxu0 0
    %779 = vmatprep.subr.bf16.mxu0 0
    %780 = vmatpush1.bf16.msra.mxu0 0
    %781 = vmatprep.subr.bf16.mxu0 0
    %782 = vmatpush1.bf16.msra.mxu0 0
    %783 = vmatprep.subr.bf16.mxu0 0
    %784 = vmatpush1.bf16.msra.mxu0 0
    %785 = vmatprep.subr.bf16.mxu0 0
    %786 = vmatpush1.bf16.msra.mxu0 0
    %787 = vmatprep.subr.bf16.mxu0 0
    %788 = vmatpush1.bf16.msra.mxu0 0
    %789 = vmatprep.subr.bf16.mxu0 0
    %790 = vmatpush1.bf16.msra.mxu0 0
    %791 = vmatprep.subr.bf16.mxu0 0
    %792 = vmatpush1.bf16.msra.mxu0 0
    %793 = vmatprep.subr.bf16.mxu0 0
    %794 = vmatpush1.bf16.msra.mxu0 0
    %795 = vmatprep.subr.bf16.mxu0 0
    %796 = vmatpush1.bf16.msra.mxu0 0
    %797 = vmatprep.mubr.bf16.mxu0 0
    %798 = vmatmul.mubr.bf16.gmra.mrb[0].mxu0 %v763
    %v799 = vpop.f32.mrb[0].mxu0
    %v800 = vadd.f32 0.0, %v799
    %v801 = vpop.f32.mrb[0].mxu0
    %v802 = vpop.f32.mrb[0].mxu0
    %v803 = vadd.f32 0.0, %v802
    %v804 = vpop.f32.mrb[0].mxu0
    %805 = vdwg.mxu0
    %v806 = vmul.f32 %v800, %v756
    %v807 = vmul.f32 %v803, %v757
    %808 = vrot.lane.b32.xlu0 %v444, 32
    %v809 = vpop.permute.xlu0 %808
    %810 = vrot.lane.b32.xlu0 %v445, 32
    %v811 = vpop.permute.xlu0 %810
    %v813 = vsel %vm447, %v809, 0
    %v816 = vsel %vm447, %v811, 0
    %818 = vmatprep.subr.bf16.mxu0 0
    %819 = vmatpush1.bf16.xpose.msra.mxu0 %v816
    %820 = vmatprep.subr.bf16.mxu0 0
    %821 = vmatpush1.bf16.xpose.msra.mxu0 0
    %822 = vmatprep.subr.bf16.mxu0 0
    %823 = vmatpush1.bf16.xpose.msra.mxu0 0
    %824 = vmatprep.subr.bf16.mxu0 0
    %825 = vmatpush1.bf16.xpose.msra.mxu0 0
    %826 = vmatprep.subr.bf16.mxu0 0
    %827 = vmatpush1.bf16.xpose.msra.mxu0 0
    %828 = vmatprep.subr.bf16.mxu0 0
    %829 = vmatpush1.bf16.xpose.msra.mxu0 0
    %830 = vmatprep.subr.bf16.mxu0 0
    %831 = vmatpush1.bf16.xpose.msra.mxu0 0
    %832 = vmatprep.subr.bf16.mxu0 0
    %833 = vmatpush1.bf16.xpose.msra.mxu0 0
    %834 = vmatprep.subr.bf16.mxu0 0
    %835 = vmatpush1.bf16.xpose.msra.mxu0 0
    %836 = vmatprep.subr.bf16.mxu0 0
    %837 = vmatpush1.bf16.xpose.msra.mxu0 0
    %838 = vmatprep.subr.bf16.mxu0 0
    %839 = vmatpush1.bf16.xpose.msra.mxu0 0
    %840 = vmatprep.subr.bf16.mxu0 0
    %841 = vmatpush1.bf16.xpose.msra.mxu0 0
    %842 = vmatprep.subr.bf16.mxu0 0
    %843 = vmatpush1.bf16.xpose.msra.mxu0 0
    %844 = vmatprep.subr.bf16.mxu0 0
    %845 = vmatpush1.bf16.xpose.msra.mxu0 0
    %846 = vmatprep.subr.bf16.mxu0 0
    %847 = vmatpush1.bf16.xpose.msra.mxu0 0
    %848 = vmatprep.subr.bf16.mxu0 0
    %849 = vmatpush1.bf16.xpose.msra.mxu0 0
    %850 = vmatprep.mubr.bf16.mxu0 0
    %851 = vmatmul.mubr.bf16.gmra.mrb[0].mxu0 %v813
    %v852 = vpop.f32.mrb[0].mxu0
    %v853 = vadd.f32 0.0, %v852
    %v854 = vpop.f32.mrb[0].mxu0
    %v855 = vpop.f32.mrb[0].mxu0
    %v856 = vadd.f32 0.0, %v855
    %v857 = vpop.f32.mrb[0].mxu0
    %858 = vdwg.mxu0
    %v859 = vsel %vm495, %v853, -inf
    %860 = vmax.xlane.f32.xlu0 %v859
    %v861 = vpop.xlane.xlu0 %860
    %v862 = vsel %vm495, %v856, -inf
    %863 = vmax.xlane.f32.xlu0 %v862
    %v864 = vpop.xlane.xlu0 %863
    %v865 = vsub.f32 %v853, %v861
    %v866 = vsub.f32 %v856, %v864
    %v867 = vmul.f32 %v865, 1.442695
    %v868 = vpow.pop %v867
    %v869 = vmul.f32 %v866, 1.442695
    %v870 = vpow.pop %v869
    %v871 = vsel %vm495, %v868, 0.0
    %872 = vadd.xlane.f32.xlu0 %v871
    %v873 = vpop.xlane.xlu0 %872
    %v874 = vsel %vm495, %v870, 0.0
    %875 = vadd.xlane.f32.xlu0 %v874
    %v876 = vpop.xlane.xlu0 %875
    %v877 = vrcp.pop %v873
    %v878 = vrcp.pop %v876
    %v879 = vpack.c.bf16 %v870, %v868
    %880 = vrot.lane.b32.xlu0 %v446, 32
    %v881 = vpop.permute.xlu0 %880
    %v884 = vsel %vm495, %v879, 0
    %886 = vmatprep.subr.bf16.mxu0 0
    %887 = vmatpush1.bf16.msra.mxu0 %v881
    %888 = vmatprep.subr.bf16.mxu0 0
    %889 = vmatpush1.bf16.msra.mxu0 0
    %890 = vmatprep.subr.bf16.mxu0 0
    %891 = vmatpush1.bf16.msra.mxu0 0
    %892 = vmatprep.subr.bf16.mxu0 0
    %893 = vmatpush1.bf16.msra.mxu0 0
    %894 = vmatprep.subr.bf16.mxu0 0
    %895 = vmatpush1.bf16.msra.mxu0 0
    %896 = vmatprep.subr.bf16.mxu0 0
    %897 = vmatpush1.bf16.msra.mxu0 0
    %898 = vmatprep.subr.bf16.mxu0 0
    %899 = vmatpush1.bf16.msra.mxu0 0
    %900 = vmatprep.subr.bf16.mxu0 0
    %901 = vmatpush1.bf16.msra.mxu0 0
    %902 = vmatprep.subr.bf16.mxu0 0
    %903 = vmatpush1.bf16.msra.mxu0 0
    %904 = vmatprep.subr.bf16.mxu0 0
    %905 = vmatpush1.bf16.msra.mxu0 0
    %906 = vmatprep.subr.bf16.mxu0 0
    %907 = vmatpush1.bf16.msra.mxu0 0
    %908 = vmatprep.subr.bf16.mxu0 0
    %909 = vmatpush1.bf16.msra.mxu0 0
    %910 = vmatprep.subr.bf16.mxu0 0
    %911 = vmatpush1.bf16.msra.mxu0 0
    %912 = vmatprep.subr.bf16.mxu0 0
    %913 = vmatpush1.bf16.msra.mxu0 0
    %914 = vmatprep.subr.bf16.mxu0 0
    %915 = vmatpush1.bf16.msra.mxu0 0
    %916 = vmatprep.subr.bf16.mxu0 0
    %917 = vmatpush1.bf16.msra.mxu0 0
    %918 = vmatprep.mubr.bf16.mxu0 0
    %919 = vmatmul.mubr.bf16.gmra.mrb[0].mxu0 %v884
    %v920 = vpop.f32.mrb[0].mxu0
    %v921 = vadd.f32 0.0, %v920
    %v922 = vpop.f32.mrb[0].mxu0
    %v923 = vpop.f32.mrb[0].mxu0
    %v924 = vadd.f32 0.0, %v923
    %v925 = vpop.f32.mrb[0].mxu0
    %926 = vdwg.mxu0
    %v927 = vmul.f32 %v921, %v877
    %v928 = vmul.f32 %v924, %v878
    %931 = vrot.lane.b32.xlu0 %v685, 32
    %v932 = vpop.permute.xlu0 %931
    %933 = vrot.lane.b32.xlu0 %v686, 32
    %v934 = vpop.permute.xlu0 %933
    %939 = vrot.lane.b32.xlu0 %v806, 64
    %v940 = vpop.permute.xlu0 %939
    %941 = vrot.lane.b32.xlu0 %v807, 64
    %v942 = vpop.permute.xlu0 %941
    %947 = vrot.lane.b32.xlu0 %v927, 96
    %v948 = vpop.permute.xlu0 %947
    %949 = vrot.lane.b32.xlu0 %v928, 96
    %v950 = vpop.permute.xlu0 %949
    %v953 = vsel %vm447, %v561, %v932
    %v954 = vsel %vm447, %v562, %v934
    %vm955 = vcmask 523264
    %v956 = vsel %vm955, %v953, %v940
    %v957 = vsel %vm955, %v954, %v942
    %vm958 = vcmask 785408
    %v959 = vsel %vm958, %v956, %v948
    %v960 = vsel %vm958, %v957, %v950
    %v961 = vpack.c.bf16 %v960, %v959
    %962 = vst [vmem:[#allocation2] sm:$0xff] %v961
    %v963 = vpack.c.bf16 %v327, %v323
    %v964 = vpack.c.bf16 %v329, %v325
    %v965 = vpack.c.bf16 %v377, %v374
    %v967 = vsel %vm447, %v963, 0
    %v970 = vsel %vm447, %v964, 0
    %972 = vmatprep.subr.bf16.mxu0 0
    %973 = vmatpush1.bf16.xpose.msra.mxu0 %v970
    %974 = vmatprep.subr.bf16.mxu0 0
    %975 = vmatpush1.bf16.xpose.msra.mxu0 0
    %976 = vmatprep.subr.bf16.mxu0 0
    %977 = vmatpush1.bf16.xpose.msra.mxu0 0
    %978 = vmatprep.subr.bf16.mxu0 0
    %979 = vmatpush1.bf16.xpose.msra.mxu0 0
    %980 = vmatprep.subr.bf16.mxu0 0
    %981 = vmatpush1.bf16.xpose.msra.mxu0 0
    %982 = vmatprep.subr.bf16.mxu0 0
    %983 = vmatpush1.bf16.xpose.msra.mxu0 0
    %984 = vmatprep.subr.bf16.mxu0 0
    %985 = vmatpush1.bf16.xpose.msra.mxu0 0
    %986 = vmatprep.subr.bf16.mxu0 0
    %987 = vmatpush1.bf16.xpose.msra.mxu0 0
    %988 = vmatprep.subr.bf16.mxu0 0
    %989 = vmatpush1.bf16.xpose.msra.mxu0 0
    %990 = vmatprep.subr.bf16.mxu0 0
    %991 = vmatpush1.bf16.xpose.msra.mxu0 0
    %992 = vmatprep.subr.bf16.mxu0 0
    %993 = vmatpush1.bf16.xpose.msra.mxu0 0
    %994 = vmatprep.subr.bf16.mxu0 0
    %995 = vmatpush1.bf16.xpose.msra.mxu0 0
    %996 = vmatprep.subr.bf16.mxu0 0
    %997 = vmatpush1.bf16.xpose.msra.mxu0 0
    %998 = vmatprep.subr.bf16.mxu0 0
    %999 = vmatpush1.bf16.xpose.msra.mxu0 0
    %1000 = vmatprep.subr.bf16.mxu0 0
    %1001 = vmatpush1.bf16.xpose.msra.mxu0 0
    %1002 = vmatprep.subr.bf16.mxu0 0
    %1003 = vmatpush1.bf16.xpose.msra.mxu0 0
    %1004 = vmatprep.mubr.bf16.mxu0 0
    %1005 = vmatmul.mubr.bf16.gmra.mrb[0].mxu0 %v967
    %v1006 = vpop.f32.mrb[0].mxu0
    %v1007 = vadd.f32 0.0, %v1006
    %v1008 = vpop.f32.mrb[0].mxu0
    %v1009 = vpop.f32.mrb[0].mxu0
    %v1010 = vadd.f32 0.0, %v1009
    %v1011 = vpop.f32.mrb[0].mxu0
    %1012 = vdwg.mxu0
    %v1013 = vsel %vm495, %v1007, -inf
    %1014 = vmax.xlane.f32.xlu0 %v1013
    %v1015 = vpop.xlane.xlu0 %1014
    %v1016 = vsel %vm495, %v1010, -inf
    %1017 = vmax.xlane.f32.xlu0 %v1016
    %v1018 = vpop.xlane.xlu0 %1017
    %v1019 = vsub.f32 %v1007, %v1015
    %v1020 = vsub.f32 %v1010, %v1018
    %v1021 = vmul.f32 %v1019, 1.442695
    %v1022 = vpow.pop %v1021
    %v1023 = vmul.f32 %v1020, 1.442695
    %v1024 = vpow.pop %v1023
    %v1025 = vsel %vm495, %v1022, 0.0
    %1026 = vadd.xlane.f32.xlu0 %v1025
    %v1027 = vpop.xlane.xlu0 %1026
    %v1028 = vsel %vm495, %v1024, 0.0
    %1029 = vadd.xlane.f32.xlu0 %v1028
    %v1030 = vpop.xlane.xlu0 %1029
    %v1031 = vrcp.pop %v1027
    %v1032 = vrcp.pop %v1030
    %v1033 = vpack.c.bf16 %v1024, %v1022
    %v1035 = vsel %vm495, %v1033, 0
    %1037 = vmatprep.subr.bf16.mxu0 0
    %1038 = vmatpush1.bf16.msra.mxu0 %v965
    %1039 = vmatprep.subr.bf16.mxu0 0
    %1040 = vmatpush1.bf16.msra.mxu0 0
    %1041 = vmatprep.subr.bf16.mxu0 0
    %1042 = vmatpush1.bf16.msra.mxu0 0
    %1043 = vmatprep.subr.bf16.mxu0 0
    %1044 = vmatpush1.bf16.msra.mxu0 0
    %1045 = vmatprep.subr.bf16.mxu0 0
    %1046 = vmatpush1.bf16.msra.mxu0 0
    %1047 = vmatprep.subr.bf16.mxu0 0
    %1048 = vmatpush1.bf16.msra.mxu0 0
    %1049 = vmatprep.subr.bf16.mxu0 0
    %1050 = vmatpush1.bf16.msra.mxu0 0
    %1051 = vmatprep.subr.bf16.mxu0 0
    %1052 = vmatpush1.bf16.msra.mxu0 0
    %1053 = vmatprep.subr.bf16.mxu0 0
    %1054 = vmatpush1.bf16.msra.mxu0 0
    %1055 = vmatprep.subr.bf16.mxu0 0
    %1056 = vmatpush1.bf16.msra.mxu0 0
    %1057 = vmatprep.subr.bf16.mxu0 0
    %1058 = vmatpush1.bf16.msra.mxu0 0
    %1059 = vmatprep.subr.bf16.mxu0 0
    %1060 = vmatpush1.bf16.msra.mxu0 0
    %1061 = vmatprep.subr.bf16.mxu0 0
    %1062 = vmatpush1.bf16.msra.mxu0 0
    %1063 = vmatprep.subr.bf16.mxu0 0
    %1064 = vmatpush1.bf16.msra.mxu0 0
    %1065 = vmatprep.subr.bf16.mxu0 0
    %1066 = vmatpush1.bf16.msra.mxu0 0
    %1067 = vmatprep.subr.bf16.mxu0 0
    %1068 = vmatpush1.bf16.msra.mxu0 0
    %1069 = vmatprep.mubr.bf16.mxu0 0
    %1070 = vmatmul.mubr.bf16.gmra.mrb[0].mxu0 %v1035
    %v1071 = vpop.f32.mrb[0].mxu0
    %v1072 = vadd.f32 0.0, %v1071
    %v1073 = vpop.f32.mrb[0].mxu0
    %v1074 = vpop.f32.mrb[0].mxu0
    %v1075 = vadd.f32 0.0, %v1074
    %v1076 = vpop.f32.mrb[0].mxu0
    %1077 = vdwg.mxu0
    %v1078 = vmul.f32 %v1072, %v1031
    %v1079 = vmul.f32 %v1075, %v1032
    %1081 = vrot.lane.b32.xlu0 %v963, 96
    %v1082 = vpop.permute.xlu0 %1081
    %1084 = vrot.lane.b32.xlu0 %v964, 96
    %v1085 = vpop.permute.xlu0 %1084
    %v1087 = vsel %vm447, %v1082, 0
    %v1090 = vsel %vm447, %v1085, 0
    %1092 = vmatprep.subr.bf16.mxu0 0
    %1093 = vmatpush1.bf16.xpose.msra.mxu0 %v1090
    %1094 = vmatprep.subr.bf16.mxu0 0
    %1095 = vmatpush1.bf16.xpose.msra.mxu0 0
    %1096 = vmatprep.subr.bf16.mxu0 0
    %1097 = vmatpush1.bf16.xpose.msra.mxu0 0
    %1098 = vmatprep.subr.bf16.mxu0 0
    %1099 = vmatpush1.bf16.xpose.msra.mxu0 0
    %1100 = vmatprep.subr.bf16.mxu0 0
    %1101 = vmatpush1.bf16.xpose.msra.mxu0 0
    %1102 = vmatprep.subr.bf16.mxu0 0
    %1103 = vmatpush1.bf16.xpose.msra.mxu0 0
    %1104 = vmatprep.subr.bf16.mxu0 0
    %1105 = vmatpush1.bf16.xpose.msra.mxu0 0
    %1106 = vmatprep.subr.bf16.mxu0 0
    %1107 = vmatpush1.bf16.xpose.msra.mxu0 0
    %1108 = vmatprep.subr.bf16.mxu0 0
    %1109 = vmatpush1.bf16.xpose.msra.mxu0 0
    %1110 = vmatprep.subr.bf16.mxu0 0
    %1111 = vmatpush1.bf16.xpose.msra.mxu0 0
    %1112 = vmatprep.subr.bf16.mxu0 0
    %1113 = vmatpush1.bf16.xpose.msra.mxu0 0
    %1114 = vmatprep.subr.bf16.mxu0 0
    %1115 = vmatpush1.bf16.xpose.msra.mxu0 0
    %1116 = vmatprep.subr.bf16.mxu0 0
    %1117 = vmatpush1.bf16.xpose.msra.mxu0 0
    %1118 = vmatprep.subr.bf16.mxu0 0
    %1119 = vmatpush1.bf16.xpose.msra.mxu0 0
    %1120 = vmatprep.subr.bf16.mxu0 0
    %1121 = vmatpush1.bf16.xpose.msra.mxu0 0
    %1122 = vmatprep.subr.bf16.mxu0 0
    %1123 = vmatpush1.bf16.xpose.msra.mxu0 0
    %1124 = vmatprep.mubr.bf16.mxu0 0
    %1125 = vmatmul.mubr.bf16.gmra.mrb[0].mxu0 %v1087
    %v1126 = vpop.f32.mrb[0].mxu0
    %v1127 = vadd.f32 0.0, %v1126
    %v1128 = vpop.f32.mrb[0].mxu0
    %v1129 = vpop.f32.mrb[0].mxu0
    %v1130 = vadd.f32 0.0, %v1129
    %v1131 = vpop.f32.mrb[0].mxu0
    %1132 = vdwg.mxu0
    %v1133 = vsel %vm495, %v1127, -inf
    %1134 = vmax.xlane.f32.xlu0 %v1133
    %v1135 = vpop.xlane.xlu0 %1134
    %v1136 = vsel %vm495, %v1130, -inf
    %1137 = vmax.xlane.f32.xlu0 %v1136
    %v1138 = vpop.xlane.xlu0 %1137
    %v1139 = vsub.f32 %v1127, %v1135
    %v1140 = vsub.f32 %v1130, %v1138
    %v1141 = vmul.f32 %v1139, 1.442695
    %v1142 = vpow.pop %v1141
    %v1143 = vmul.f32 %v1140, 1.442695
    %v1144 = vpow.pop %v1143
    %v1145 = vsel %vm495, %v1142, 0.0
    %1146 = vadd.xlane.f32.xlu0 %v1145
    %v1147 = vpop.xlane.xlu0 %1146
    %v1148 = vsel %vm495, %v1144, 0.0
    %1149 = vadd.xlane.f32.xlu0 %v1148
    %v1150 = vpop.xlane.xlu0 %1149
    %v1151 = vrcp.pop %v1147
    %v1152 = vrcp.pop %v1150
    %v1153 = vpack.c.bf16 %v1144, %v1142
    %1155 = vrot.lane.b32.xlu0 %v965, 96
    %v1156 = vpop.permute.xlu0 %1155
    %v1159 = vsel %vm495, %v1153, 0
    %1161 = vmatprep.subr.bf16.mxu0 0
    %1162 = vmatpush1.bf16.msra.mxu0 %v1156
    %1163 = vmatprep.subr.bf16.mxu0 0
    %1164 = vmatpush1.bf16.msra.mxu0 0
    %1165 = vmatprep.subr.bf16.mxu0 0
    %1166 = vmatpush1.bf16.msra.mxu0 0
    %1167 = vmatprep.subr.bf16.mxu0 0
    %1168 = vmatpush1.bf16.msra.mxu0 0
    %1169 = vmatprep.subr.bf16.mxu0 0
    %1170 = vmatpush1.bf16.msra.mxu0 0
    %1171 = vmatprep.subr.bf16.mxu0 0
    %1172 = vmatpush1.bf16.msra.mxu0 0
    %1173 = vmatprep.subr.bf16.mxu0 0
    %1174 = vmatpush1.bf16.msra.mxu0 0
    %1175 = vmatprep.subr.bf16.mxu0 0
    %1176 = vmatpush1.bf16.msra.mxu0 0
    %1177 = vmatprep.subr.bf16.mxu0 0
    %1178 = vmatpush1.bf16.msra.mxu0 0
    %1179 = vmatprep.subr.bf16.mxu0 0
    %1180 = vmatpush1.bf16.msra.mxu0 0
    %1181 = vmatprep.subr.bf16.mxu0 0
    %1182 = vmatpush1.bf16.msra.mxu0 0
    %1183 = vmatprep.subr.bf16.mxu0 0
    %1184 = vmatpush1.bf16.msra.mxu0 0
    %1185 = vmatprep.subr.bf16.mxu0 0
    %1186 = vmatpush1.bf16.msra.mxu0 0
    %1187 = vmatprep.subr.bf16.mxu0 0
    %1188 = vmatpush1.bf16.msra.mxu0 0
    %1189 = vmatprep.subr.bf16.mxu0 0
    %1190 = vmatpush1.bf16.msra.mxu0 0
    %1191 = vmatprep.subr.bf16.mxu0 0
    %1192 = vmatpush1.bf16.msra.mxu0 0
    %1193 = vmatprep.mubr.bf16.mxu0 0
    %1194 = vmatmul.mubr.bf16.gmra.mrb[0].mxu0 %v1159
    %v1195 = vpop.f32.mrb[0].mxu0
    %v1196 = vadd.f32 0.0, %v1195
    %v1197 = vpop.f32.mrb[0].mxu0
    %v1198 = vpop.f32.mrb[0].mxu0
    %v1199 = vadd.f32 0.0, %v1198
    %v1200 = vpop.f32.mrb[0].mxu0
    %1201 = vdwg.mxu0
    %v1202 = vmul.f32 %v1196, %v1151
    %v1203 = vmul.f32 %v1199, %v1152
    %1204 = vrot.lane.b32.xlu0 %v963, 64
    %v1205 = vpop.permute.xlu0 %1204
    %1206 = vrot.lane.b32.xlu0 %v964, 64
    %v1207 = vpop.permute.xlu0 %1206
    %v1209 = vsel %vm447, %v1205, 0
    %v1212 = vsel %vm447, %v1207, 0
    %1214 = vmatprep.subr.bf16.mxu0 0
    %1215 = vmatpush1.bf16.xpose.msra.mxu0 %v1212
    %1216 = vmatprep.subr.bf16.mxu0 0
    %1217 = vmatpush1.bf16.xpose.msra.mxu0 0
    %1218 = vmatprep.subr.bf16.mxu0 0
    %1219 = vmatpush1.bf16.xpose.msra.mxu0 0
    %1220 = vmatprep.subr.bf16.mxu0 0
    %1221 = vmatpush1.bf16.xpose.msra.mxu0 0
    %1222 = vmatprep.subr.bf16.mxu0 0
    %1223 = vmatpush1.bf16.xpose.msra.mxu0 0
    %1224 = vmatprep.subr.bf16.mxu0 0
    %1225 = vmatpush1.bf16.xpose.msra.mxu0 0
    %1226 = vmatprep.subr.bf16.mxu0 0
    %1227 = vmatpush1.bf16.xpose.msra.mxu0 0
    %1228 = vmatprep.subr.bf16.mxu0 0
    %1229 = vmatpush1.bf16.xpose.msra.mxu0 0
    %1230 = vmatprep.subr.bf16.mxu0 0
    %1231 = vmatpush1.bf16.xpose.msra.mxu0 0
    %1232 = vmatprep.subr.bf16.mxu0 0
    %1233 = vmatpush1.bf16.xpose.msra.mxu0 0
    %1234 = vmatprep.subr.bf16.mxu0 0
    %1235 = vmatpush1.bf16.xpose.msra.mxu0 0
    %1236 = vmatprep.subr.bf16.mxu0 0
    %1237 = vmatpush1.bf16.xpose.msra.mxu0 0
    %1238 = vmatprep.subr.bf16.mxu0 0
    %1239 = vmatpush1.bf16.xpose.msra.mxu0 0
    %1240 = vmatprep.subr.bf16.mxu0 0
    %1241 = vmatpush1.bf16.xpose.msra.mxu0 0
    %1242 = vmatprep.subr.bf16.mxu0 0
    %1243 = vmatpush1.bf16.xpose.msra.mxu0 0
    %1244 = vmatprep.subr.bf16.mxu0 0
    %1245 = vmatpush1.bf16.xpose.msra.mxu0 0
    %1246 = vmatprep.mubr.bf16.mxu0 0
    %1247 = vmatmul.mubr.bf16.gmra.mrb[0].mxu0 %v1209
    %v1248 = vpop.f32.mrb[0].mxu0
    %v1249 = vadd.f32 0.0, %v1248
    %v1250 = vpop.f32.mrb[0].mxu0
    %v1251 = vpop.f32.mrb[0].mxu0
    %v1252 = vadd.f32 0.0, %v1251
    %v1253 = vpop.f32.mrb[0].mxu0
    %1254 = vdwg.mxu0
    %v1255 = vsel %vm495, %v1249, -inf
    %1256 = vmax.xlane.f32.xlu0 %v1255
    %v1257 = vpop.xlane.xlu0 %1256
    %v1258 = vsel %vm495, %v1252, -inf
    %1259 = vmax.xlane.f32.xlu0 %v1258
    %v1260 = vpop.xlane.xlu0 %1259
    %v1261 = vsub.f32 %v1249, %v1257
    %v1262 = vsub.f32 %v1252, %v1260
    %v1263 = vmul.f32 %v1261, 1.442695
    %v1264 = vpow.pop %v1263
    %v1265 = vmul.f32 %v1262, 1.442695
    %v1266 = vpow.pop %v1265
    %v1267 = vsel %vm495, %v1264, 0.0
    %1268 = vadd.xlane.f32.xlu0 %v1267
    %v1269 = vpop.xlane.xlu0 %1268
    %v1270 = vsel %vm495, %v1266, 0.0
    %1271 = vadd.xlane.f32.xlu0 %v1270
    %v1272 = vpop.xlane.xlu0 %1271
    %v1273 = vrcp.pop %v1269
    %v1274 = vrcp.pop %v1272
    %v1275 = vpack.c.bf16 %v1266, %v1264
    %1276 = vrot.lane.b32.xlu0 %v965, 64
    %v1277 = vpop.permute.xlu0 %1276
    %v1280 = vsel %vm495, %v1275, 0
    %1282 = vmatprep.subr.bf16.mxu0 0
    %1283 = vmatpush1.bf16.msra.mxu0 %v1277
    %1284 = vmatprep.subr.bf16.mxu0 0
    %1285 = vmatpush1.bf16.msra.mxu0 0
    %1286 = vmatprep.subr.bf16.mxu0 0
    %1287 = vmatpush1.bf16.msra.mxu0 0
    %1288 = vmatprep.subr.bf16.mxu0 0
    %1289 = vmatpush1.bf16.msra.mxu0 0
    %1290 = vmatprep.subr.bf16.mxu0 0
    %1291 = vmatpush1.bf16.msra.mxu0 0
    %1292 = vmatprep.subr.bf16.mxu0 0
    %1293 = vmatpush1.bf16.msra.mxu0 0
    %1294 = vmatprep.subr.bf16.mxu0 0
    %1295 = vmatpush1.bf16.msra.mxu0 0
    %1296 = vmatprep.subr.bf16.mxu0 0
    %1297 = vmatpush1.bf16.msra.mxu0 0
    %1298 = vmatprep.subr.bf16.mxu0 0
    %1299 = vmatpush1.bf16.msra.mxu0 0
    %1300 = vmatprep.subr.bf16.mxu0 0
    %1301 = vmatpush1.bf16.msra.mxu0 0
    %1302 = vmatprep.subr.bf16.mxu0 0
    %1303 = vmatpush1.bf16.msra.mxu0 0
    %1304 = vmatprep.subr.bf16.mxu0 0
    %1305 = vmatpush1.bf16.msra.mxu0 0
    %1306 = vmatprep.subr.bf16.mxu0 0
    %1307 = vmatpush1.bf16.msra.mxu0 0
    %1308 = vmatprep.subr.bf16.mxu0 0
    %1309 = vmatpush1.bf16.msra.mxu0 0
    %1310 = vmatprep.subr.bf16.mxu0 0
    %1311 = vmatpush1.bf16.msra.mxu0 0
    %1312 = vmatprep.subr.bf16.mxu0 0
    %1313 = vmatpush1.bf16.msra.mxu0 0
    %1314 = vmatprep.mubr.bf16.mxu0 0
    %1315 = vmatmul.mubr.bf16.gmra.mrb[0].mxu0 %v1280
    %v1316 = vpop.f32.mrb[0].mxu0
    %v1317 = vadd.f32 0.0, %v1316
    %v1318 = vpop.f32.mrb[0].mxu0
    %v1319 = vpop.f32.mrb[0].mxu0
    %v1320 = vadd.f32 0.0, %v1319
    %v1321 = vpop.f32.mrb[0].mxu0
    %1322 = vdwg.mxu0
    %v1323 = vmul.f32 %v1317, %v1273
    %v1324 = vmul.f32 %v1320, %v1274
    %1325 = vrot.lane.b32.xlu0 %v963, 32
    %v1326 = vpop.permute.xlu0 %1325
    %1327 = vrot.lane.b32.xlu0 %v964, 32
    %v1328 = vpop.permute.xlu0 %1327
    %v1330 = vsel %vm447, %v1326, 0
    %v1333 = vsel %vm447, %v1328, 0
    %1335 = vmatprep.subr.bf16.mxu0 0
    %1336 = vmatpush1.bf16.xpose.msra.mxu0 %v1333
    %1337 = vmatprep.subr.bf16.mxu0 0
    %1338 = vmatpush1.bf16.xpose.msra.mxu0 0
    %1339 = vmatprep.subr.bf16.mxu0 0
    %1340 = vmatpush1.bf16.xpose.msra.mxu0 0
    %1341 = vmatprep.subr.bf16.mxu0 0
    %1342 = vmatpush1.bf16.xpose.msra.mxu0 0
    %1343 = vmatprep.subr.bf16.mxu0 0
    %1344 = vmatpush1.bf16.xpose.msra.mxu0 0
    %1345 = vmatprep.subr.bf16.mxu0 0
    %1346 = vmatpush1.bf16.xpose.msra.mxu0 0
    %1347 = vmatprep.subr.bf16.mxu0 0
    %1348 = vmatpush1.bf16.xpose.msra.mxu0 0
    %1349 = vmatprep.subr.bf16.mxu0 0
    %1350 = vmatpush1.bf16.xpose.msra.mxu0 0
    %1351 = vmatprep.subr.bf16.mxu0 0
    %1352 = vmatpush1.bf16.xpose.msra.mxu0 0
    %1353 = vmatprep.subr.bf16.mxu0 0
    %1354 = vmatpush1.bf16.xpose.msra.mxu0 0
    %1355 = vmatprep.subr.bf16.mxu0 0
    %1356 = vmatpush1.bf16.xpose.msra.mxu0 0
    %1357 = vmatprep.subr.bf16.mxu0 0
    %1358 = vmatpush1.bf16.xpose.msra.mxu0 0
    %1359 = vmatprep.subr.bf16.mxu0 0
    %1360 = vmatpush1.bf16.xpose.msra.mxu0 0
    %1361 = vmatprep.subr.bf16.mxu0 0
    %1362 = vmatpush1.bf16.xpose.msra.mxu0 0
    %1363 = vmatprep.subr.bf16.mxu0 0
    %1364 = vmatpush1.bf16.xpose.msra.mxu0 0
    %1365 = vmatprep.subr.bf16.mxu0 0
    %1366 = vmatpush1.bf16.xpose.msra.mxu0 0
    %1367 = vmatprep.mubr.bf16.mxu0 0
    %1368 = vmatmul.mubr.bf16.gmra.mrb[0].mxu0 %v1330
    %v1369 = vpop.f32.mrb[0].mxu0
    %v1370 = vadd.f32 0.0, %v1369
    %v1371 = vpop.f32.mrb[0].mxu0
    %v1372 = vpop.f32.mrb[0].mxu0
    %v1373 = vadd.f32 0.0, %v1372
    %v1374 = vpop.f32.mrb[0].mxu0
    %1375 = vdwg.mxu0
    %v1376 = vsel %vm495, %v1370, -inf
    %1377 = vmax.xlane.f32.xlu0 %v1376
    %v1378 = vpop.xlane.xlu0 %1377
    %v1379 = vsel %vm495, %v1373, -inf
    %1380 = vmax.xlane.f32.xlu0 %v1379
    %v1381 = vpop.xlane.xlu0 %1380
    %v1382 = vsub.f32 %v1370, %v1378
    %v1383 = vsub.f32 %v1373, %v1381
    %v1384 = vmul.f32 %v1382, 1.442695
    %v1385 = vpow.pop %v1384
    %v1386 = vmul.f32 %v1383, 1.442695
    %v1387 = vpow.pop %v1386
    %v1388 = vsel %vm495, %v1385, 0.0
    %1389 = vadd.xlane.f32.xlu0 %v1388
    %v1390 = vpop.xlane.xlu0 %1389
    %v1391 = vsel %vm495, %v1387, 0.0
    %1392 = vadd.xlane.f32.xlu0 %v1391
    %v1393 = vpop.xlane.xlu0 %1392
    %v1394 = vrcp.pop %v1390
    %v1395 = vrcp.pop %v1393
    %v1396 = vpack.c.bf16 %v1387, %v1385
    %1397 = vrot.lane.b32.xlu0 %v965, 32
    %v1398 = vpop.permute.xlu0 %1397
    %v1401 = vsel %vm495, %v1396, 0
    %1403 = vmatprep.subr.bf16.mxu0 0
    %1404 = vmatpush1.bf16.msra.mxu0 %v1398
    %1405 = vmatprep.subr.bf16.mxu0 0
    %1406 = vmatpush1.bf16.msra.mxu0 0
    %1407 = vmatprep.subr.bf16.mxu0 0
    %1408 = vmatpush1.bf16.msra.mxu0 0
    %1409 = vmatprep.subr.bf16.mxu0 0
    %1410 = vmatpush1.bf16.msra.mxu0 0
    %1411 = vmatprep.subr.bf16.mxu0 0
    %1412 = vmatpush1.bf16.msra.mxu0 0
    %1413 = vmatprep.subr.bf16.mxu0 0
    %1414 = vmatpush1.bf16.msra.mxu0 0
    %1415 = vmatprep.subr.bf16.mxu0 0
    %1416 = vmatpush1.bf16.msra.mxu0 0
    %1417 = vmatprep.subr.bf16.mxu0 0
    %1418 = vmatpush1.bf16.msra.mxu0 0
    %1419 = vmatprep.subr.bf16.mxu0 0
    %1420 = vmatpush1.bf16.msra.mxu0 0
    %1421 = vmatprep.subr.bf16.mxu0 0
    %1422 = vmatpush1.bf16.msra.mxu0 0
    %1423 = vmatprep.subr.bf16.mxu0 0
    %1424 = vmatpush1.bf16.msra.mxu0 0
    %1425 = vmatprep.subr.bf16.mxu0 0
    %1426 = vmatpush1.bf16.msra.mxu0 0
    %1427 = vmatprep.subr.bf16.mxu0 0
    %1428 = vmatpush1.bf16.msra.mxu0 0
    %1429 = vmatprep.subr.bf16.mxu0 0
    %1430 = vmatpush1.bf16.msra.mxu0 0
    %1431 = vmatprep.subr.bf16.mxu0 0
    %1432 = vmatpush1.bf16.msra.mxu0 0
    %1433 = vmatprep.subr.bf16.mxu0 0
    %1434 = vmatpush1.bf16.msra.mxu0 0
    %1435 = vmatprep.mubr.bf16.mxu0 0
    %1436 = vmatmul.mubr.bf16.gmra.mrb[0].mxu0 %v1401
    %v1437 = vpop.f32.mrb[0].mxu0
    %v1438 = vadd.f32 0.0, %v1437
    %v1439 = vpop.f32.mrb[0].mxu0
    %v1440 = vpop.f32.mrb[0].mxu0
    %v1441 = vadd.f32 0.0, %v1440
    %v1442 = vpop.f32.mrb[0].mxu0
    %1443 = vdwg.mxu0
    %v1444 = vmul.f32 %v1438, %v1394
    %v1445 = vmul.f32 %v1441, %v1395
    %1448 = vrot.lane.b32.xlu0 %v1202, 32
    %v1449 = vpop.permute.xlu0 %1448
    %1450 = vrot.lane.b32.xlu0 %v1203, 32
    %v1451 = vpop.permute.xlu0 %1450
    %1456 = vrot.lane.b32.xlu0 %v1323, 64
    %v1457 = vpop.permute.xlu0 %1456
    %1458 = vrot.lane.b32.xlu0 %v1324, 64
    %v1459 = vpop.permute.xlu0 %1458
    %1464 = vrot.lane.b32.xlu0 %v1444, 96
    %v1465 = vpop.permute.xlu0 %1464
    %1466 = vrot.lane.b32.xlu0 %v1445, 96
    %v1467 = vpop.permute.xlu0 %1466
    %v1470 = vsel %vm447, %v1078, %v1449
    %v1471 = vsel %vm447, %v1079, %v1451
    %v1472 = vsel %vm955, %v1470, %v1457
    %v1473 = vsel %vm955, %v1471, %v1459
    %v1474 = vsel %vm958, %v1472, %v1465
    %v1475 = vsel %vm958, %v1473, %v1467
    %v1476 = vpack.c.bf16 %v1475, %v1474
    %1477 = vst [vmem:[#allocation2 + $0x8] sm:$0xff] %v1476
    %v1478 = vld [vmem:[#allocation2] sm:$0xff]
    %v1479 = vld [vmem:[#allocation2 + $0x8] sm:$0xff]
    %v1480 = vlaneseq
    %v1481 = vshrl.u32 %v1480, 7
    %v1482 = vsub.s32 3, %v1481
    %v1483 = vrot.slane %v97, %v1482
    %v1500 = vunpack.c.l.b16 %v380
    %v1501 = vunpack.c.l.b16 %v381
    %v1502 = vunpack.c.l.b16 %v382
    %v1503 = vunpack.c.l.b16 %v383
    %v1504 = vunpack.c.l.b16 %v384
    %v1505 = vunpack.c.l.b16 %v385
    %v1506 = vunpack.c.l.b16 %v386
    %v1507 = vunpack.c.l.b16 %v387
    %v1508 = vunpack.c.l.b16 %v388
    %v1509 = vunpack.c.l.b16 %v389
    %v1510 = vunpack.c.l.b16 %v390
    %v1511 = vunpack.c.l.b16 %v391
    %v1512 = vunpack.c.l.b16 %v392
    %v1513 = vunpack.c.l.b16 %v393
    %v1514 = vunpack.c.l.b16 %v394
    %v1515 = vunpack.c.l.b16 %v395
    %v1516 = vpack.c.b16 %v1501, %v1500
    %v1517 = vpack.c.b16 %v1503, %v1502
    %v1518 = vpack.c.b16 %v1505, %v1504
    %v1519 = vpack.c.b16 %v1507, %v1506
    %v1520 = vpack.c.b16 %v1509, %v1508
    %v1521 = vpack.c.b16 %v1511, %v1510
    %v1522 = vpack.c.b16 %v1513, %v1512
    %v1523 = vpack.c.b16 %v1515, %v1514
    %1532 = vmatprep.subr.bf16.mxu0 0
    %1533 = vmatpush1.bf16.msra.mxu0 %v1516
    %1534 = vmatprep.subr.bf16.mxu0 0
    %1535 = vmatpush1.bf16.msra.mxu0 %v1517
    %1536 = vmatprep.subr.bf16.mxu0 0
    %1537 = vmatpush1.bf16.msra.mxu0 %v1518
    %1538 = vmatprep.subr.bf16.mxu0 0
    %1539 = vmatpush1.bf16.msra.mxu0 %v1519
    %1540 = vmatprep.subr.bf16.mxu0 0
    %1541 = vmatpush1.bf16.msra.mxu0 %v1520
    %1542 = vmatprep.subr.bf16.mxu0 0
    %1543 = vmatpush1.bf16.msra.mxu0 %v1521
    %1544 = vmatprep.subr.bf16.mxu0 0
    %1545 = vmatpush1.bf16.msra.mxu0 %v1522
    %1546 = vmatprep.subr.bf16.mxu0 0
    %1547 = vmatpush1.bf16.msra.mxu0 %v1523
    %1548 = vmatprep.subr.bf16.mxu0 0
    %1549 = vmatpush1.bf16.msra.mxu0 0
    %1550 = vmatprep.subr.bf16.mxu0 0
    %1551 = vmatpush1.bf16.msra.mxu0 0
    %1552 = vmatprep.subr.bf16.mxu0 0
    %1553 = vmatpush1.bf16.msra.mxu0 0
    %1554 = vmatprep.subr.bf16.mxu0 0
    %1555 = vmatpush1.bf16.msra.mxu0 0
    %1556 = vmatprep.subr.bf16.mxu0 0
    %1557 = vmatpush1.bf16.msra.mxu0 0
    %1558 = vmatprep.subr.bf16.mxu0 0
    %1559 = vmatpush1.bf16.msra.mxu0 0
    %1560 = vmatprep.subr.bf16.mxu0 0
    %1561 = vmatpush1.bf16.msra.mxu0 0
    %1562 = vmatprep.subr.bf16.mxu0 0
    %1563 = vmatpush1.bf16.msra.mxu0 0
    %1564 = vmatprep.mubr.bf16.mxu0 0
    %1565 = vmatmul.mubr.bf16.gmra.mrb[0].mxu0 %v1478
    %v1566 = vpop.f32.mrb[0].mxu0
    %v1567 = vadd.f32 %v1483, %v1566
    %v1568 = vpop.f32.mrb[0].mxu0
    %v1569 = vpop.f32.mrb[0].mxu0
    %v1570 = vadd.f32 %v1483, %v1569
    %v1571 = vpop.f32.mrb[0].mxu0
    %1572 = vmatprep.mubr.bf16.mxu0 0
    %1573 = vmatmul.mubr.bf16.gmra.mrb[0].mxu0 %v1479
    %v1574 = vpop.f32.mrb[0].mxu0
    %v1575 = vadd.f32 %v1483, %v1574
    %v1576 = vpop.f32.mrb[0].mxu0
    %v1577 = vpop.f32.mrb[0].mxu0
    %v1578 = vadd.f32 %v1483, %v1577
    %v1579 = vpop.f32.mrb[0].mxu0
    %1580 = vdwg.mxu0
    %v1581 = vadd.f32 %v93, %v1567
    %v1582 = vadd.f32 %v94, %v1570
    %v1583 = vadd.f32 %v95, %v1575
    %v1584 = vadd.f32 %v96, %v1578
    %1585 = vadd.xlane.f32.xlu0 %v1581
    %v1586 = vpop.xlane.xlu0 %1585
    %1587 = vadd.xlane.f32.xlu0 %v1582
    %v1588 = vpop.xlane.xlu0 %1587
    %1589 = vadd.xlane.f32.xlu0 %v1583
    %v1590 = vpop.xlane.xlu0 %1589
    %1591 = vadd.xlane.f32.xlu0 %v1584
    %v1592 = vpop.xlane.xlu0 %1591
    %v1593 = vrcp.pop 128.0
    %v1594 = vmul.f32 %v1586, %v1593
    %v1595 = vmul.f32 %v1588, %v1593
    %v1596 = vmul.f32 %v1590, %v1593
    %v1597 = vmul.f32 %v1592, %v1593
    %v1598 = vsub.f32 %v1581, %v1594
    %v1599 = vsub.f32 %v1582, %v1595
    %v1600 = vsub.f32 %v1583, %v1596
    %v1601 = vsub.f32 %v1584, %v1597
    %v1602 = vmul.f32 %v1598, %v1598
    %v1603 = vmul.f32 %v1599, %v1599
    %v1604 = vmul.f32 %v1600, %v1600
    %v1605 = vmul.f32 %v1601, %v1601
    %1606 = vadd.xlane.f32.xlu0 %v1602
    %v1607 = vpop.xlane.xlu0 %1606
    %1608 = vadd.xlane.f32.xlu0 %v1603
    %v1609 = vpop.xlane.xlu0 %1608
    %1610 = vadd.xlane.f32.xlu0 %v1604
    %v1611 = vpop.xlane.xlu0 %1610
    %1612 = vadd.xlane.f32.xlu0 %v1605
    %v1613 = vpop.xlane.xlu0 %1612
    %v1614 = vmul.f32 %v1607, %v1593
    %v1615 = vmul.f32 %v1609, %v1593
    %v1616 = vmul.f32 %v1611, %v1593
    %v1617 = vmul.f32 %v1613, %v1593
    %v1618 = vadd.f32 %v1614, 1e-05
    %v1619 = vadd.f32 %v1615, 1e-05
    %v1620 = vadd.f32 %v1616, 1e-05
    %v1621 = vadd.f32 %v1617, 1e-05
    %v1622 = vrsqrt.pop %v1618
    %v1623 = vrsqrt.pop %v1619
    %v1624 = vrsqrt.pop %v1620
    %v1625 = vrsqrt.pop %v1621
    %v1626 = vmul.f32 %v1598, %v1622
    %v1627 = vmul.f32 %v1599, %v1623
    %v1628 = vmul.f32 %v1600, %v1624
    %v1629 = vmul.f32 %v1601, %v1625
    %v1630 = vlaneseq
    %v1631 = vshrl.u32 %v1630, 7
    %v1632 = vsub.s32 4, %v1631
    %v1633 = vrot.slane %v97, %v1632
    %v1634 = vmul.f32 %v1626, %v1633
    %v1635 = vmul.f32 %v1627, %v1633
    %v1636 = vmul.f32 %v1628, %v1633
    %v1637 = vmul.f32 %v1629, %v1633
    %v1638 = vlaneseq
    %v1639 = vshrl.u32 %v1638, 7
    %v1640 = vsub.s32 5, %v1639
    %v1641 = vrot.slane %v97, %v1640
    %v1642 = vadd.f32 %v1634, %v1641
    %v1643 = vadd.f32 %v1635, %v1641
    %v1644 = vadd.f32 %v1636, %v1641
    %v1645 = vadd.f32 %v1637, %v1641
    %v1646 = vadd.f32 %v93, %v1642
    %v1647 = vadd.f32 %v94, %v1643
    %v1648 = vadd.f32 %v95, %v1644
    %v1649 = vadd.f32 %v96, %v1645
    %1650 = vadd.xlane.f32.xlu0 %v1646
    %v1651 = vpop.xlane.xlu0 %1650
    %1652 = vadd.xlane.f32.xlu0 %v1647
    %v1653 = vpop.xlane.xlu0 %1652
    %1654 = vadd.xlane.f32.xlu0 %v1648
    %v1655 = vpop.xlane.xlu0 %1654
    %1656 = vadd.xlane.f32.xlu0 %v1649
    %v1657 = vpop.xlane.xlu0 %1656
    %v1658 = vmul.f32 %v1651, %v1593
    %v1659 = vmul.f32 %v1653, %v1593
    %v1660 = vmul.f32 %v1655, %v1593
    %v1661 = vmul.f32 %v1657, %v1593
    %v1662 = vsub.f32 %v1646, %v1658
    %v1663 = vsub.f32 %v1647, %v1659
    %v1664 = vsub.f32 %v1648, %v1660
    %v1665 = vsub.f32 %v1649, %v1661
    %v1666 = vmul.f32 %v1662, %v1662
    %v1667 = vmul.f32 %v1663, %v1663
    %v1668 = vmul.f32 %v1664, %v1664
    %v1669 = vmul.f32 %v1665, %v1665
    %1670 = vadd.xlane.f32.xlu0 %v1666
    %v1671 = vpop.xlane.xlu0 %1670
    %1672 = vadd.xlane.f32.xlu0 %v1667
    %v1673 = vpop.xlane.xlu0 %1672
    %1674 = vadd.xlane.f32.xlu0 %v1668
    %v1675 = vpop.xlane.xlu0 %1674
    %1676 = vadd.xlane.f32.xlu0 %v1669
    %v1677 = vpop.xlane.xlu0 %1676
    %v1678 = vmul.f32 %v1671, %v1593
    %v1679 = vmul.f32 %v1673, %v1593
    %v1680 = vmul.f32 %v1675, %v1593
    %v1681 = vmul.f32 %v1677, %v1593
    %v1682 = vadd.f32 %v1678, 1e-05
    %v1683 = vadd.f32 %v1679, 1e-05
    %v1684 = vadd.f32 %v1680, 1e-05
    %v1685 = vadd.f32 %v1681, 1e-05
    %v1686 = vrsqrt.pop %v1682
    %v1687 = vrsqrt.pop %v1683
    %v1688 = vrsqrt.pop %v1684
    %v1689 = vrsqrt.pop %v1685
    %v1690 = vmul.f32 %v1662, %v1686
    %v1691 = vmul.f32 %v1663, %v1687
    %v1692 = vmul.f32 %v1664, %v1688
    %v1693 = vmul.f32 %v1665, %v1689
    %v1694 = vlaneseq
    %v1695 = vshrl.u32 %v1694, 7
    %v1696 = vsub.s32 6, %v1695
    %v1697 = vrot.slane %v97, %v1696
    %v1698 = vmul.f32 %v1690, %v1697
    %v1699 = vmul.f32 %v1691, %v1697
    %v1700 = vmul.f32 %v1692, %v1697
    %v1701 = vmul.f32 %v1693, %v1697
    %v1702 = vlaneseq
    %v1703 = vshrl.u32 %v1702, 7
    %v1704 = vsub.s32 7, %v1703
    %v1705 = vrot.slane %v97, %v1704
    %v1706 = vadd.f32 %v1698, %v1705
    %v1707 = vadd.f32 %v1699, %v1705
    %v1708 = vadd.f32 %v1700, %v1705
    %v1709 = vadd.f32 %v1701, %v1705
    %v1711 = vrot.slane %v98, 1
    %v1713 = vpack.c.bf16 %v1707, %v1706
    %v1714 = vpack.c.bf16 %v1709, %v1708
    %v1715 = vlaneseq
    %v1716 = vshrl.u32 %v1715, 7
    %v1717 = vsub.s32 3, %v1716
    %v1718 = vrot.slane %v98, %v1717
    %v1719 = vlaneseq
    %v1720 = vshrl.u32 %v1719, 7
    %v1721 = vsub.s32 3, %v1720
    %v1722 = vrot.slane %v1711, %v1721
    %v1739 = vunpack.c.l.b16 %v396
    %v1740 = vunpack.c.h.b16 %v396
    %v1741 = vunpack.c.l.b16 %v397
    %v1742 = vunpack.c.h.b16 %v397
    %v1743 = vunpack.c.l.b16 %v398
    %v1744 = vunpack.c.h.b16 %v398
    %v1745 = vunpack.c.l.b16 %v399
    %v1746 = vunpack.c.h.b16 %v399
    %v1747 = vunpack.c.l.b16 %v400
    %v1748 = vunpack.c.h.b16 %v400
    %v1749 = vunpack.c.l.b16 %v401
    %v1750 = vunpack.c.h.b16 %v401
    %v1751 = vunpack.c.l.b16 %v402
    %v1752 = vunpack.c.h.b16 %v402
    %v1753 = vunpack.c.l.b16 %v403
    %v1754 = vunpack.c.h.b16 %v403
    %v1755 = vunpack.c.l.b16 %v404
    %v1756 = vunpack.c.h.b16 %v404
    %v1757 = vunpack.c.l.b16 %v405
    %v1758 = vunpack.c.h.b16 %v405
    %v1759 = vunpack.c.l.b16 %v406
    %v1760 = vunpack.c.h.b16 %v406
    %v1761 = vunpack.c.l.b16 %v407
    %v1762 = vunpack.c.h.b16 %v407
    %v1763 = vunpack.c.l.b16 %v408
    %v1764 = vunpack.c.h.b16 %v408
    %v1765 = vunpack.c.l.b16 %v409
    %v1766 = vunpack.c.h.b16 %v409
    %v1767 = vunpack.c.l.b16 %v410
    %v1768 = vunpack.c.h.b16 %v410
    %v1769 = vunpack.c.l.b16 %v411
    %v1770 = vunpack.c.h.b16 %v411
    %v1771 = vpack.c.b16 %v1741, %v1739
    %v1772 = vpack.c.b16 %v1742, %v1740
    %v1773 = vpack.c.b16 %v1745, %v1743
    %v1774 = vpack.c.b16 %v1746, %v1744
    %v1775 = vpack.c.b16 %v1749, %v1747
    %v1776 = vpack.c.b16 %v1750, %v1748
    %v1777 = vpack.c.b16 %v1753, %v1751
    %v1778 = vpack.c.b16 %v1754, %v1752
    %v1779 = vpack.c.b16 %v1757, %v1755
    %v1780 = vpack.c.b16 %v1758, %v1756
    %v1781 = vpack.c.b16 %v1761, %v1759
    %v1782 = vpack.c.b16 %v1762, %v1760
    %v1783 = vpack.c.b16 %v1765, %v1763
    %v1784 = vpack.c.b16 %v1766, %v1764
    %v1785 = vpack.c.b16 %v1769, %v1767
    %v1786 = vpack.c.b16 %v1770, %v1768
    %1803 = vmatprep.subr.bf16.mxu0 %v1772
    %1804 = vmatpush1.bf16.msra.mxu0 %v1771
    %1805 = vmatprep.subr.bf16.mxu0 %v1774
    %1806 = vmatpush1.bf16.msra.mxu0 %v1773
    %1807 = vmatprep.subr.bf16.mxu0 %v1776
    %1808 = vmatpush1.bf16.msra.mxu0 %v1775
    %1809 = vmatprep.subr.bf16.mxu0 %v1778
    %1810 = vmatpush1.bf16.msra.mxu0 %v1777
    %1811 = vmatprep.subr.bf16.mxu0 %v1780
    %1812 = vmatpush1.bf16.msra.mxu0 %v1779
    %1813 = vmatprep.subr.bf16.mxu0 %v1782
    %1814 = vmatpush1.bf16.msra.mxu0 %v1781
    %1815 = vmatprep.subr.bf16.mxu0 %v1784
    %1816 = vmatpush1.bf16.msra.mxu0 %v1783
    %1817 = vmatprep.subr.bf16.mxu0 %v1786
    %1818 = vmatpush1.bf16.msra.mxu0 %v1785
    %1819 = vmatprep.subr.bf16.mxu0 0
    %1820 = vmatpush1.bf16.msra.mxu0 0
    %1821 = vmatprep.subr.bf16.mxu0 0
    %1822 = vmatpush1.bf16.msra.mxu0 0
    %1823 = vmatprep.subr.bf16.mxu0 0
    %1824 = vmatpush1.bf16.msra.mxu0 0
    %1825 = vmatprep.subr.bf16.mxu0 0
    %1826 = vmatpush1.bf16.msra.mxu0 0
    %1827 = vmatprep.subr.bf16.mxu0 0
    %1828 = vmatpush1.bf16.msra.mxu0 0
    %1829 = vmatprep.subr.bf16.mxu0 0
    %1830 = vmatpush1.bf16.msra.mxu0 0
    %1831 = vmatprep.subr.bf16.mxu0 0
    %1832 = vmatpush1.bf16.msra.mxu0 0
    %1833 = vmatprep.subr.bf16.mxu0 0
    %1834 = vmatpush1.bf16.msra.mxu0 0
    %1835 = vmatprep.mubr.bf16.mxu0 0
    %1836 = vmatmul.mubr.bf16.gmra.mrb[0].mxu0 %v1713
    %v1837 = vpop.f32.mrb[0].mxu0
    %v1838 = vadd.f32 %v1718, %v1837
    %v1839 = vpop.f32.mrb[0].mxu0
    %v1840 = vadd.f32 %v1722, %v1839
    %v1841 = vpop.f32.mrb[0].mxu0
    %v1842 = vadd.f32 %v1718, %v1841
    %v1843 = vpop.f32.mrb[0].mxu0
    %v1844 = vadd.f32 %v1722, %v1843
    %1845 = vmatprep.mubr.bf16.mxu0 0
    %1846 = vmatmul.mubr.bf16.gmra.mrb[0].mxu0 %v1714
    %v1847 = vpop.f32.mrb[0].mxu0
    %v1848 = vadd.f32 %v1718, %v1847
    %v1849 = vpop.f32.mrb[0].mxu0
    %v1850 = vadd.f32 %v1722, %v1849
    %v1851 = vpop.f32.mrb[0].mxu0
    %v1852 = vadd.f32 %v1718, %v1851
    %v1853 = vpop.f32.mrb[0].mxu0
    %v1854 = vadd.f32 %v1722, %v1853
    %1855 = vdwg.mxu0
    %v1856 = vmax.f32 %v1838, 0.0
    %v1857 = vmax.f32 %v1840, 0.0
    %v1858 = vmax.f32 %v1842, 0.0
    %v1859 = vmax.f32 %v1844, 0.0
    %v1860 = vmax.f32 %v1848, 0.0
    %v1861 = vmax.f32 %v1850, 0.0
    %v1862 = vmax.f32 %v1852, 0.0
    %v1863 = vmax.f32 %v1854, 0.0
    %v1864 = vpack.c.bf16 %v1858, %v1856
    %v1865 = vpack.c.bf16 %v1859, %v1857
    %v1866 = vpack.c.bf16 %v1862, %v1860
    %v1867 = vpack.c.bf16 %v1863, %v1861
    %v1868 = vlaneseq
    %v1869 = vshrl.u32 %v1868, 7
    %v1870 = vsub.s32 0, %v1869
    %v1871 = vrot.slane %v98, %v1870
    %v1904 = vunpack.c.l.b16 %v412
    %v1905 = vunpack.c.l.b16 %v413
    %v1906 = vunpack.c.l.b16 %v414
    %v1907 = vunpack.c.l.b16 %v415
    %v1908 = vunpack.c.l.b16 %v416
    %v1909 = vunpack.c.l.b16 %v417
    %v1910 = vunpack.c.l.b16 %v418
    %v1911 = vunpack.c.l.b16 %v419
    %v1912 = vunpack.c.l.b16 %v420
    %v1913 = vunpack.c.l.b16 %v421
    %v1914 = vunpack.c.l.b16 %v422
    %v1915 = vunpack.c.l.b16 %v423
    %v1916 = vunpack.c.l.b16 %v424
    %v1917 = vunpack.c.l.b16 %v425
    %v1918 = vunpack.c.l.b16 %v426
    %v1919 = vunpack.c.l.b16 %v427
    %v1920 = vunpack.c.l.b16 %v428
    %v1921 = vunpack.c.l.b16 %v429
    %v1922 = vunpack.c.l.b16 %v430
    %v1923 = vunpack.c.l.b16 %v431
    %v1924 = vunpack.c.l.b16 %v432
    %v1925 = vunpack.c.l.b16 %v433
    %v1926 = vunpack.c.l.b16 %v434
    %v1927 = vunpack.c.l.b16 %v435
    %v1928 = vunpack.c.l.b16 %v436
    %v1929 = vunpack.c.l.b16 %v437
    %v1930 = vunpack.c.l.b16 %v438
    %v1931 = vunpack.c.l.b16 %v439
    %v1932 = vunpack.c.l.b16 %v440
    %v1933 = vunpack.c.l.b16 %v441
    %v1934 = vunpack.c.l.b16 %v442
    %v1935 = vunpack.c.l.b16 %v443
    %v1936 = vpack.c.b16 %v1905, %v1904
    %v1937 = vpack.c.b16 %v1907, %v1906
    %v1938 = vpack.c.b16 %v1909, %v1908
    %v1939 = vpack.c.b16 %v1911, %v1910
    %v1940 = vpack.c.b16 %v1913, %v1912
    %v1941 = vpack.c.b16 %v1915, %v1914
    %v1942 = vpack.c.b16 %v1917, %v1916
    %v1943 = vpack.c.b16 %v1919, %v1918
    %v1944 = vpack.c.b16 %v1921, %v1920
    %v1945 = vpack.c.b16 %v1923, %v1922
    %v1946 = vpack.c.b16 %v1925, %v1924
    %v1947 = vpack.c.b16 %v1927, %v1926
    %v1948 = vpack.c.b16 %v1929, %v1928
    %v1949 = vpack.c.b16 %v1931, %v1930
    %v1950 = vpack.c.b16 %v1933, %v1932
    %v1951 = vpack.c.b16 %v1935, %v1934
    %1968 = vmatprep.subr.bf16.mxu0 0
    %1969 = vmatpush1.bf16.msra.mxu0 %v1936
    %1970 = vmatprep.subr.bf16.mxu0 0
    %1971 = vmatpush1.bf16.msra.mxu0 %v1937
    %1972 = vmatprep.subr.bf16.mxu0 0
    %1973 = vmatpush1.bf16.msra.mxu0 %v1938
    %1974 = vmatprep.subr.bf16.mxu0 0
    %1975 = vmatpush1.bf16.msra.mxu0 %v1939
    %1976 = vmatprep.subr.bf16.mxu0 0
    %1977 = vmatpush1.bf16.msra.mxu0 %v1940
    %1978 = vmatprep.subr.bf16.mxu0 0
    %1979 = vmatpush1.bf16.msra.mxu0 %v1941
    %1980 = vmatprep.subr.bf16.mxu0 0
    %1981 = vmatpush1.bf16.msra.mxu0 %v1942
    %1982 = vmatprep.subr.bf16.mxu0 0
    %1983 = vmatpush1.bf16.msra.mxu0 %v1943
    %1984 = vmatprep.subr.bf16.mxu0 0
    %1985 = vmatpush1.bf16.msra.mxu0 %v1944
    %1986 = vmatprep.subr.bf16.mxu0 0
    %1987 = vmatpush1.bf16.msra.mxu0 %v1945
    %1988 = vmatprep.subr.bf16.mxu0 0
    %1989 = vmatpush1.bf16.msra.mxu0 %v1946
    %1990 = vmatprep.subr.bf16.mxu0 0
    %1991 = vmatpush1.bf16.msra.mxu0 %v1947
    %1992 = vmatprep.subr.bf16.mxu0 0
    %1993 = vmatpush1.bf16.msra.mxu0 %v1948
    %1994 = vmatprep.subr.bf16.mxu0 0
    %1995 = vmatpush1.bf16.msra.mxu0 %v1949
    %1996 = vmatprep.subr.bf16.mxu0 0
    %1997 = vmatpush1.bf16.msra.mxu0 %v1950
    %1998 = vmatprep.subr.bf16.mxu0 0
    %1999 = vmatpush1.bf16.msra.mxu0 %v1951
    %2000 = vmatprep.mubr.bf16.mxu0 %v1865
    %2001 = vmatmul.mubr.bf16.gmra.mrb[0].mxu0 %v1864
    %v2002 = vpop.f32.mrb[0].mxu0
    %v2003 = vadd.f32 %v1871, %v2002
    %v2004 = vpop.f32.mrb[0].mxu0
    %v2005 = vpop.f32.mrb[0].mxu0
    %v2006 = vadd.f32 %v1871, %v2005
    %v2007 = vpop.f32.mrb[0].mxu0
    %2008 = vmatprep.mubr.bf16.mxu0 %v1867
    %2009 = vmatmul.mubr.bf16.gmra.mrb[0].mxu0 %v1866
    %v2010 = vpop.f32.mrb[0].mxu0
    %v2011 = vadd.f32 %v1871, %v2010
    %v2012 = vpop.f32.mrb[0].mxu0
    %v2013 = vpop.f32.mrb[0].mxu0
    %v2014 = vadd.f32 %v1871, %v2013
    %v2015 = vpop.f32.mrb[0].mxu0
    %2016 = vdwg.mxu0
    %v2017 = vadd.f32 %v1706, %v2003
    %v2018 = vadd.f32 %v1707, %v2006
    %v2019 = vadd.f32 %v1708, %v2011
    %v2020 = vadd.f32 %v1709, %v2014
    %2021 = vadd.xlane.f32.xlu0 %v2017
    %v2022 = vpop.xlane.xlu0 %2021
    %2023 = vadd.xlane.f32.xlu0 %v2018
    %v2024 = vpop.xlane.xlu0 %2023
    %2025 = vadd.xlane.f32.xlu0 %v2019
    %v2026 = vpop.xlane.xlu0 %2025
    %2027 = vadd.xlane.f32.xlu0 %v2020
    %v2028 = vpop.xlane.xlu0 %2027
    %v2029 = vmul.f32 %v2022, %v1593
    %v2030 = vmul.f32 %v2024, %v1593
    %v2031 = vmul.f32 %v2026, %v1593
    %v2032 = vmul.f32 %v2028, %v1593
    %v2033 = vsub.f32 %v2017, %v2029
    %v2034 = vsub.f32 %v2018, %v2030
    %v2035 = vsub.f32 %v2019, %v2031
    %v2036 = vsub.f32 %v2020, %v2032
    %v2037 = vmul.f32 %v2033, %v2033
    %v2038 = vmul.f32 %v2034, %v2034
    %v2039 = vmul.f32 %v2035, %v2035
    %v2040 = vmul.f32 %v2036, %v2036
    %2041 = vadd.xlane.f32.xlu0 %v2037
    %v2042 = vpop.xlane.xlu0 %2041
    %2043 = vadd.xlane.f32.xlu0 %v2038
    %v2044 = vpop.xlane.xlu0 %2043
    %2045 = vadd.xlane.f32.xlu0 %v2039
    %v2046 = vpop.xlane.xlu0 %2045
    %2047 = vadd.xlane.f32.xlu0 %v2040
    %v2048 = vpop.xlane.xlu0 %2047
    %v2049 = vmul.f32 %v2042, %v1593
    %v2050 = vmul.f32 %v2044, %v1593
    %v2051 = vmul.f32 %v2046, %v1593
    %v2052 = vmul.f32 %v2048, %v1593
    %v2053 = vadd.f32 %v2049, 1e-05
    %v2054 = vadd.f32 %v2050, 1e-05
    %v2055 = vadd.f32 %v2051, 1e-05
    %v2056 = vadd.f32 %v2052, 1e-05
    %v2057 = vrsqrt.pop %v2053
    %v2058 = vrsqrt.pop %v2054
    %v2059 = vrsqrt.pop %v2055
    %v2060 = vrsqrt.pop %v2056
    %v2061 = vmul.f32 %v2033, %v2057
    %v2062 = vmul.f32 %v2034, %v2058
    %v2063 = vmul.f32 %v2035, %v2059
    %v2064 = vmul.f32 %v2036, %v2060
    %v2065 = vlaneseq
    %v2066 = vshrl.u32 %v2065, 7
    %v2067 = vsub.s32 1, %v2066
    %v2068 = vrot.slane %v98, %v2067
    %v2069 = vmul.f32 %v2061, %v2068
    %v2070 = vmul.f32 %v2062, %v2068
    %v2071 = vmul.f32 %v2063, %v2068
    %v2072 = vmul.f32 %v2064, %v2068
    %v2073 = vlaneseq
    %v2074 = vshrl.u32 %v2073, 7
    %v2075 = vsub.s32 2, %v2074
    %v2076 = vrot.slane %v98, %v2075
    %v2077 = vadd.f32 %v2069, %v2076
    %v2078 = vadd.f32 %v2070, %v2076
    %v2079 = vadd.f32 %v2071, %v2076
    %v2080 = vadd.f32 %v2072, %v2076
    %2081 = vst [vmem:[#allocation12] sm:$0xff] %v2077
    %2082 = vst [vmem:[#allocation12 + $0x8] sm:$0xff] %v2078
    %2083 = vst [vmem:[#allocation12 + $0x10] sm:$0xff] %v2079
    %2084 = vst [vmem:[#allocation12 + $0x18] sm:$0xff] %v2080
    // Predicated region
    $region46: #{tpu_custom_call.1} parent=1 // pred_check
      _
    $region47: #{tpu_custom_call.1} parent=1 // pred_check_branch
      %2086 = sbr.rel (0) target = $region49
    $region48: #{tpu_custom_call.1} parent=1 // pred_region
      %s2088 = ssub.s32 512, 512
      %2089 = vsyncadd [#allocation5], %s2088
      %s2090 = sshll.u32 [#allocation12], 4
      %s2091 = int_to_ptr.vmem [resolvable:$true] %s2090
      %2096 = dma.vmem_to_hbm [thread:$0]  %s2091, 512, %s6, [#allocation5], 128, 128, 8
    $region49: #{tpu_custom_call.1} parent=1 // pred_fallthru
      _
    // Predicated region
    $region50: #{tpu_custom_call.1} parent=1 // pred_check
      _
    $region51: #{tpu_custom_call.1} parent=1 // pred_check_branch
      %2098 = sbr.rel (0) target = $region53
    $region52: #{tpu_custom_call.1} parent=1 // pred_region
      %2099 = dma.done [#allocation5], 512
    $region53: #{tpu_custom_call.1} parent=1 // pred_fallthru
      _
    %2100 = vsyncpa [#allocation4], 1
    %2101 = vsyncpa [#allocation7], 1
    %2102 = vsyncpa [#allocation10], 1
    %2103 = vsyncpa [#allocation5], 1

</llo_original>
